<compile_context>
chip_gen: v7x
topology: tpu7x:2x2x1
jax: 0.10.0
libtpu: 0.0.40
codegen_flags: <defaults>
</compile_context>

<pallas_src>
import jax
import jax.numpy as jnp
from jax.experimental import pallas as pl
from jax.experimental.pallas import tpu as pltpu

PAIRWISE_EPS = 1e-6  # torch.nn.functional.pairwise_distance default eps


def _round_up(x, m):
    return ((x + m - 1) // m) * m


def _device_config():
    """Per-TPU-generation tile / VMEM defaults (conservative fallback)."""
    kind = ""
    try:
        kind = jax.devices()[0].device_kind.lower()
    except Exception:
        pass
    is_v7 = "v7" in kind
    big_vmem = (("v5" in kind) or ("v6" in kind)) and not is_v7
    if big_vmem:
        # v5e/v5p/v6e: 128 MiB physical VMEM -> bigger frame tiles, higher limit.
        return {"tb": 128, "tf": 32, "vmem": 96 * 1024 * 1024, "split_batch": False}
    # v7x (64 MiB VMEM, 2 TensorCores) and safe default everywhere else.
    return {"tb": 128, "tf": 16, "vmem": 48 * 1024 * 1024, "split_batch": is_v7}


def _make_kernel(TB, TF, F, nf):
    has_ragged_tail = (F % TF) != 0
    n_tail = F % TF  # static Python int (valid frames in the last tile)

    def _tile_max(ref):
        # Max over the frame (sublane) axis of a full (TB, TF, D) tile.
        return jnp.max(ref[...], axis=1).astype(jnp.float32)

    def _masked_tile_max(ref):
        # Ragged last frame tile: only the first n_tail frames are valid; the
        # rest of the boundary block is unspecified -> mask before the max.
        x = ref[...]
        fid = jax.lax.broadcasted_iota(jnp.int32, (1,) + x.shape[1:], 1)
        x = jnp.where(fid < n_tail, x, jnp.finfo(x.dtype).min)
        return jnp.max(x, axis=1).astype(jnp.float32)

    def kernel(vfeat_ref, afeat_ref, wv_ref, bv_ref, wfc_ref,
               out_ref, vmax_sc, amax_sc):
        # vfeat_ref: (TB, TF, 1024)   afeat_ref: (TB, TF, 128)
        # wv_ref: (1024, 128)  bv_ref: (1, 128)  wfc_ref: (128, 96)
        # out_ref: (TB, 128)   vmax_sc: (TB, 1024)  amax_sc: (TB, 128)
        f = pl.program_id(1)

        @pl.when(f == 0)
        def _init():
            vmax_sc[...] = jnp.full_like(vmax_sc, -jnp.inf)
            amax_sc[...] = jnp.full_like(amax_sc, -jnp.inf)

        if not has_ragged_tail:
            # Every frame tile is full -> no masking compiled at all.
            vmax_sc[...] = jnp.maximum(vmax_sc[...], _tile_max(vfeat_ref))
            amax_sc[...] = jnp.maximum(amax_sc[...], _tile_max(afeat_ref))
        else:
            @pl.when(f < nf - 1)
            def _full():
                vmax_sc[...] = jnp.maximum(vmax_sc[...], _tile_max(vfeat_ref))
                amax_sc[...] = jnp.maximum(amax_sc[...], _tile_max(afeat_ref))

            @pl.when(f == nf - 1)
            def _tail():
                vmax_sc[...] = jnp.maximum(vmax_sc[...],
                                           _masked_tile_max(vfeat_ref))
                amax_sc[...] = jnp.maximum(amax_sc[...],
                                           _masked_tile_max(afeat_ref))

        @pl.when(f == nf - 1)
        def _finalize():
            # v = relu(vmax @ Wv + bv)
            v = jnp.dot(vmax_sc[...], wv_ref[...],
                        preferred_element_type=jnp.float32)
            v = jnp.maximum(v + bv_ref[...].astype(jnp.float32), 0.0)   # (TB, 128)
            # fc bias cancels in the pairwise distance -> single fc matmul.
            diff = v - amax_sc[...]                                     # (TB, 128)
            d = jnp.dot(diff, wfc_ref[...],
                        preferred_element_type=jnp.float32) + PAIRWISE_EPS  # (TB, 96)
            dist = jnp.sqrt(jnp.sum(d * d, axis=-1, keepdims=True))    # (TB, 1)
            # Lane-dense (128-wide) store; the wrapper reads column 0.
            out_ref[...] = jnp.broadcast_to(dist, out_ref.shape)

    return kernel


def vametric2_forward(vfeat, afeat, wv, bv, wfc, *,
                      tb=None, tf=None, vmem_limit_bytes=None):
    """vfeat: (B, F, 1024), afeat: (B, F, 128) -> (B,) pairwise distances.

    Weights are pre-transposed to (in, out); bv is (1, 128).  The fc bias is
    not an input (it cancels in the distance).  F is assumed to equal the
    framenum the module was built with (MaxPool1d(framenum) == full-frame max).
    """
    B, F, DV = vfeat.shape
    DA = afeat.shape[2]          # 128
    DH = wv.shape[1]             # 128
    DO = wfc.shape[1]            # 96

    cfg = _device_config()
    tb = cfg["tb"] if tb is None else tb
    tf = cfg["tf"] if tf is None else tf
    vmem_limit_bytes = cfg["vmem"] if vmem_limit_bytes is None else vmem_limit_bytes

    # v7x: 2 TensorCores per chip -> make sure the "parallel" batch axis has
    # at least 2 tiles (when B allows it) so both cores get HBM work.
    if cfg["split_batch"] and B > 8:
        tb = min(tb, max(8, _round_up(pl.cdiv(B, 2), 8)))

    # Block dims must be multiples of 8 (tb/tf defaults are) OR the full dim.
    TB = B if B <= tb else tb
    TF = F if F <= tf else tf
    nb = pl.cdiv(B, TB)
    nf = pl.cdiv(F, TF)

    kernel = _make_kernel(TB, TF, F, nf)

    bytes_accessed = (vfeat.size * vfeat.dtype.itemsize
                      + afeat.size * afeat.dtype.itemsize
                      + wv.size * wv.dtype.itemsize
                      + bv.size * bv.dtype.itemsize
                      + wfc.size * wfc.dtype.itemsize
                      + B * 128 * 4)
    cost = pl.CostEstimate(
        flops=int(2 * B * (DV * DH + DH * DO)),
        transcendentals=0,
        bytes_accessed=int(bytes_accessed),
    )

    def _run(single_buffer_weights):
        w_mode = pl.Buffered(1) if single_buffer_weights else None
        in_specs = [
            # Streamed, double-buffered feature tiles.
            pl.BlockSpec((TB, TF, DV), lambda b, f: (b, f, 0)),
            pl.BlockSpec((TB, TF, DA), lambda b, f: (b, f, 0)),
            # Weights / bias stay resident (constant block index).
            pl.BlockSpec((DV, DH), lambda b, f: (0, 0), pipeline_mode=w_mode),
            pl.BlockSpec((1, DH), lambda b, f: (0, 0), pipeline_mode=w_mode),
            pl.BlockSpec((DH, DO), lambda b, f: (0, 0), pipeline_mode=w_mode),
        ]
        return pl.pallas_call(
            kernel,
            out_shape=jax.ShapeDtypeStruct((B, 128), jnp.float32),
            grid_spec=pltpu.PrefetchScalarGridSpec(
                num_scalar_prefetch=0,
                grid=(nb, nf),
                in_specs=in_specs,
                out_specs=pl.BlockSpec((TB, 128), lambda b, f: (b, 0)),
                scratch_shapes=[
                    pltpu.VMEM((TB, DV), jnp.float32),   # running max of vfeat
                    pltpu.VMEM((TB, DA), jnp.float32),   # running max of afeat
                ],
            ),
            compiler_params=pltpu.CompilerParams(
                dimension_semantics=("parallel", "arbitrary"),
                vmem_limit_bytes=vmem_limit_bytes,
            ),
            cost_estimate=cost,
        )(vfeat, afeat, wv, bv, wfc)

    try:
        out = _run(single_buffer_weights=True)
    except Exception:
        # pl.Buffered(1) on the resident weights is only a small VMEM saving;
        # fall back to default double-buffering if this jax build rejects it.
        out = _run(single_buffer_weights=False)

    return out[:B, 0]


def _xavier_uniform(key, fan_in, fan_out):
    # nn.init.xavier_uniform on a (out, in) weight; we build the (in, out)
    # transpose directly (same symmetric uniform distribution).
    bound = (6.0 / (fan_in + fan_out)) ** 0.5
    return jax.random.uniform(key, (fan_in, fan_out), jnp.float32, -bound, bound)


def _reference(vfeat, afeat, wv, bv, wfc, bfc):
    v = jnp.max(vfeat, axis=1)
    a = jnp.max(afeat, axis=1)
    v = jnp.maximum(v @ wv + bv, 0.0)
    v = v @ wfc + bfc
    a = a @ wfc + bfc
    d = v - a + PAIRWISE_EPS
    return jnp.sqrt(jnp.sum(d * d, axis=-1))


if __name__ == "__main__":
    DV, DH, DO = 1024, 128, 96    # fixed by nn.Linear(1024,128) / nn.Linear(128,96)

    key = jax.random.PRNGKey(0)
    kv1, ka1, kw1, kw2, kv2, ka2 = jax.random.split(key, 6)

    # Parameters (matching init_params: xavier-uniform weights, zero biases).
    wv = _xavier_uniform(kw1, DV, DH)            # vfc weight as (in, out)
    bv = jnp.zeros((1, DH), dtype=jnp.float32)
    wfc = _xavier_uniform(kw2, DH, DO)           # fc weight as (in, out)
    bfc = jnp.zeros((DO,), dtype=jnp.float32)    # only used by the reference

    # Case 1: small shapes (module built with framenum=8), single tile.
    B1, F1 = 2, 8
    vfeat1 = jax.random.normal(kv1, (B1, F1, DV), dtype=jnp.float32)
    afeat1 = jax.random.normal(ka1, (B1, F1, DH), dtype=jnp.float32)
    out1 = jax.block_until_ready(vametric2_forward(vfeat1, afeat1, wv, bv, wfc))
    ref1 = _reference(vfeat1, afeat1, wv, bv[0], wfc, bfc)
    assert out1.shape == (B1,), out1.shape
    assert jnp.allclose(out1, ref1, rtol=1e-4, atol=1e-5), (out1, ref1)

    # Case 2: ragged batch (20 = 2*8 + 4) and ragged frame tail (44 = 2*16 + 12)
    # with forced small tiles -> exercises the in-kernel tail masking and the
    # no-padding boundary handling.
    B2, F2 = 20, 44
    vfeat2 = jax.random.normal(kv2, (B2, F2, DV), dtype=jnp.float32)
    afeat2 = jax.random.normal(ka2, (B2, F2, DH), dtype=jnp.float32)
    out2 = jax.block_until_ready(
        vametric2_forward(vfeat2, afeat2, wv, bv, wfc, tb=8, tf=16))
    ref2 = _reference(vfeat2, afeat2, wv, bv[0], wfc, bfc)
    assert out2.shape == (B2,), out2.shape
    assert jnp.allclose(out2, ref2, rtol=1e-4, atol=1e-5), (out2, ref2)

    print("KERNEL_OK")
</pallas_src>

<mosaic_0001>
module attributes {stable_mosaic.version = 11 : i64} {
  func.func @kernel(%arg0: i32, %arg1: i32, %arg2: memref<2x8x1024xf32, #tpu.memory_space<vmem>>, %arg3: memref<2x8x128xf32, #tpu.memory_space<vmem>>, %arg4: memref<1024x128xf32, #tpu.memory_space<vmem>>, %arg5: memref<1x128xf32, #tpu.memory_space<vmem>>, %arg6: memref<128x96xf32, #tpu.memory_space<vmem>>, %arg7: memref<2x128xf32, #tpu.memory_space<vmem>>, %arg8: memref<2x1024xf32, #tpu.memory_space<vmem>>, %arg9: memref<2x128xf32, #tpu.memory_space<vmem>>) attributes {dimension_semantics = [#tpu.dimension_semantics<parallel>, #tpu.dimension_semantics<arbitrary>], iteration_bounds = array<i64: 1, 1>, scalar_prefetch = 0 : i64, scratch_operands = 2 : i64, tpu.core_type = #tpu.core_type<tc>, window_params = [{transform_indices = @transform_0, window_bounds = array<i64: 2, 8, 1024>}, {transform_indices = @transform_1, window_bounds = array<i64: 2, 8, 128>}, {pipeline_mode = #tpu.pipeline_mode<synchronous>, transform_indices = @transform_2, window_bounds = array<i64: 1024, 128>}, {pipeline_mode = #tpu.pipeline_mode<synchronous>, transform_indices = @transform_3, window_bounds = array<i64: 1, 128>}, {pipeline_mode = #tpu.pipeline_mode<synchronous>, transform_indices = @transform_4, window_bounds = array<i64: 128, 96>}, {transform_indices = @transform_5, window_bounds = array<i64: 2, 128>}]} {
    %c0_i32 = arith.constant 0 : i32
    %0 = arith.cmpi eq, %arg1, %c0_i32 : i32
    %1 = arith.extui %0 : i1 to i32
    %c0_i32_0 = arith.constant 0 : i32
    %2 = arith.cmpi ne, %1, %c0_i32_0 : i32
    scf.if %2 {
      %cst_17 = arith.constant 0xFF800000 : f32
      %16 = vector.broadcast %cst_17 : f32 to vector<2x1024xf32>
      %c0_18 = arith.constant 0 : index
      %c0_19 = arith.constant 0 : index
      %17 = vector.load %arg8[%c0_18, %c0_19] : memref<2x1024xf32, #tpu.memory_space<vmem>>, vector<2x1024xf32>
      tpu.vector_store %arg8[%c0_18, %c0_19], %16 {strides = array<i32>} : memref<2x1024xf32, #tpu.memory_space<vmem>>, vector<2x1024xf32>,
      %cst_20 = arith.constant 0xFF800000 : f32
      %18 = vector.broadcast %cst_20 : f32 to vector<2x128xf32>
      %c0_21 = arith.constant 0 : index
      %c0_22 = arith.constant 0 : index
      %19 = vector.load %arg9[%c0_21, %c0_22] : memref<2x128xf32, #tpu.memory_space<vmem>>, vector<2x128xf32>
      tpu.vector_store %arg9[%c0_21, %c0_22], %18 {strides = array<i32>} : memref<2x128xf32, #tpu.memory_space<vmem>>, vector<2x128xf32>,
    } else {
    }
    %c0 = arith.constant 0 : index
    %c0_1 = arith.constant 0 : index
    %3 = vector.load %arg8[%c0, %c0_1] : memref<2x1024xf32, #tpu.memory_space<vmem>>, vector<2x1024xf32>
    %c0_2 = arith.constant 0 : index
    %c0_3 = arith.constant 0 : index
    %c0_4 = arith.constant 0 : index
    %4 = vector.load %arg2[%c0_2, %c0_3, %c0_4] : memref<2x8x1024xf32, #tpu.memory_space<vmem>>, vector<2x8x1024xf32>
    %cst = arith.constant dense<0xFF800000> : vector<2x1024xf32>
    %5 = vector.multi_reduction <maximumf>, %4, %cst [1] : vector<2x8x1024xf32> to vector<2x1024xf32>
    %6 = arith.maximumf %3, %5 : vector<2x1024xf32>
    %c0_5 = arith.constant 0 : index
    %c0_6 = arith.constant 0 : index
    %7 = vector.load %arg8[%c0_5, %c0_6] : memref<2x1024xf32, #tpu.memory_space<vmem>>, vector<2x1024xf32>
    tpu.vector_store %arg8[%c0_5, %c0_6], %6 {strides = array<i32>} : memref<2x1024xf32, #tpu.memory_space<vmem>>, vector<2x1024xf32>,
    %c0_7 = arith.constant 0 : index
    %c0_8 = arith.constant 0 : index
    %8 = vector.load %arg9[%c0_7, %c0_8] : memref<2x128xf32, #tpu.memory_space<vmem>>, vector<2x128xf32>
    %c0_9 = arith.constant 0 : index
    %c0_10 = arith.constant 0 : index
    %c0_11 = arith.constant 0 : index
    %9 = vector.load %arg3[%c0_9, %c0_10, %c0_11] : memref<2x8x128xf32, #tpu.memory_space<vmem>>, vector<2x8x128xf32>
    %cst_12 = arith.constant dense<0xFF800000> : vector<2x128xf32>
    %10 = vector.multi_reduction <maximumf>, %9, %cst_12 [1] : vector<2x8x128xf32> to vector<2x128xf32>
    %11 = arith.maximumf %8, %10 : vector<2x128xf32>
    %c0_13 = arith.constant 0 : index
    %c0_14 = arith.constant 0 : index
    %12 = vector.load %arg9[%c0_13, %c0_14] : memref<2x128xf32, #tpu.memory_space<vmem>>, vector<2x128xf32>
    tpu.vector_store %arg9[%c0_13, %c0_14], %11 {strides = array<i32>} : memref<2x128xf32, #tpu.memory_space<vmem>>, vector<2x128xf32>,
    %c0_i32_15 = arith.constant 0 : i32
    %13 = arith.cmpi eq, %arg1, %c0_i32_15 : i32
    %14 = arith.extui %13 : i1 to i32
    %c0_i32_16 = arith.constant 0 : i32
    %15 = arith.cmpi ne, %14, %c0_i32_16 : i32
    scf.if %15 {
      %c0_17 = arith.constant 0 : index
      %c0_18 = arith.constant 0 : index
      %16 = vector.load %arg8[%c0_17, %c0_18] : memref<2x1024xf32, #tpu.memory_space<vmem>>, vector<2x1024xf32>
      %c0_19 = arith.constant 0 : index
      %c0_20 = arith.constant 0 : index
      %17 = vector.load %arg4[%c0_19, %c0_20] : memref<1024x128xf32, #tpu.memory_space<vmem>>, vector<1024x128xf32>
      %cst_21 = arith.constant dense<0.000000e+00> : vector<2x128xf32>
      %18 = tpu.matmul %16, %17, %cst_21 {dimension_numbers = #tpu.dot_dimension_numbers<[1], [0], [0], [1], [0, 0, 1, 1], [], []>} : vector<2x1024xf32>, vector<1024x128xf32>, vector<2x128xf32> -> vector<2x128xf32>
      %c0_22 = arith.constant 0 : index
      %c0_23 = arith.constant 0 : index
      %19 = vector.load %arg5[%c0_22, %c0_23] : memref<1x128xf32, #tpu.memory_space<vmem>>, vector<1x128xf32>
      %20 = vector.broadcast %19 : vector<1x128xf32> to vector<2x128xf32>
      %21 = arith.addf %18, %20 : vector<2x128xf32>
      %cst_24 = arith.constant 0.000000e+00 : f32
      %22 = vector.broadcast %cst_24 : f32 to vector<2x128xf32>
      %23 = arith.maximumf %21, %22 : vector<2x128xf32>
      %c0_25 = arith.constant 0 : index
      %c0_26 = arith.constant 0 : index
      %24 = vector.load %arg9[%c0_25, %c0_26] : memref<2x128xf32, #tpu.memory_space<vmem>>, vector<2x128xf32>
      %25 = arith.subf %23, %24 : vector<2x128xf32>
      %c0_27 = arith.constant 0 : index
      %c0_28 = arith.constant 0 : index
      %26 = vector.load %arg6[%c0_27, %c0_28] : memref<128x96xf32, #tpu.memory_space<vmem>>, vector<128x96xf32>
      %cst_29 = arith.constant dense<0.000000e+00> : vector<2x96xf32>
      %27 = tpu.matmul %25, %26, %cst_29 {dimension_numbers = #tpu.dot_dimension_numbers<[1], [0], [0], [1], [0, 0, 1, 1], [], []>} : vector<2x128xf32>, vector<128x96xf32>, vector<2x96xf32> -> vector<2x96xf32>
      %cst_30 = arith.constant 9.99999997E-7 : f32
      %28 = vector.broadcast %cst_30 : f32 to vector<2x96xf32>
      %29 = arith.addf %27, %28 : vector<2x96xf32>
      %30 = arith.mulf %29, %29 : vector<2x96xf32>
      %cst_31 = arith.constant dense<0.000000e+00> : vector<2xf32>
      %31 = vector.multi_reduction <add>, %30, %cst_31 [1] : vector<2x96xf32> to vector<2xf32>
      %32 = vector.shape_cast %31 : vector<2xf32> to vector<2x1xf32>
      %33 = math.sqrt %32 : vector<2x1xf32>
      %34 = vector.shape_cast %33 : vector<2x1xf32> to vector<2x1xf32>
      %35 = vector.broadcast %34 : vector<2x1xf32> to vector<2x128xf32>
      %c0_32 = arith.constant 0 : index
      %c0_33 = arith.constant 0 : index
      %36 = vector.load %arg7[%c0_32, %c0_33] : memref<2x128xf32, #tpu.memory_space<vmem>>, vector<2x128xf32>
      tpu.vector_store %arg7[%c0_32, %c0_33], %35 {strides = array<i32>} : memref<2x128xf32, #tpu.memory_space<vmem>>, vector<2x128xf32>,
    } else {
    }
    return
  }
  func.func @transform_0(%arg0: i32, %arg1: i32) -> (i32, i32, i32) {
    %c0_i32 = arith.constant 0 : i32
    %c0_i32_0 = arith.constant 0 : i32
    return %arg0, %arg1, %c0_i32 : i32, i32, i32
  }
  func.func @transform_1(%arg0: i32, %arg1: i32) -> (i32, i32, i32) {
    %c0_i32 = arith.constant 0 : i32
    %c0_i32_0 = arith.constant 0 : i32
    return %arg0, %arg1, %c0_i32 : i32, i32, i32
  }
  func.func @transform_2(%arg0: i32, %arg1: i32) -> (i32, i32) {
    %c0_i32 = arith.constant 0 : i32
    %c0_i32_0 = arith.constant 0 : i32
    %c0_i32_1 = arith.constant 0 : i32
    return %c0_i32, %c0_i32_0 : i32, i32
  }
  func.func @transform_3(%arg0: i32, %arg1: i32) -> (i32, i32) {
    %c0_i32 = arith.constant 0 : i32
    %c0_i32_0 = arith.constant 0 : i32
    %c0_i32_1 = arith.constant 0 : i32
    return %c0_i32, %c0_i32_0 : i32, i32
  }
  func.func @transform_4(%arg0: i32, %arg1: i32) -> (i32, i32) {
    %c0_i32 = arith.constant 0 : i32
    %c0_i32_0 = arith.constant 0 : i32
    %c0_i32_1 = arith.constant 0 : i32
    return %c0_i32, %c0_i32_0 : i32, i32
  }
  func.func @transform_5(%arg0: i32, %arg1: i32) -> (i32, i32) {
    %c0_i32 = arith.constant 0 : i32
    %c0_i32_0 = arith.constant 0 : i32
    return %arg0, %c0_i32 : i32, i32
  }
}

module attributes {stable_mosaic.version = 11 : i64} {
  func.func @kernel(%arg0: i32, %arg1: i32, %arg2: memref<2x8x1024xf32, #tpu.memory_space<vmem>>, %arg3: memref<2x8x128xf32, #tpu.memory_space<vmem>>, %arg4: memref<1024x128xf32, #tpu.memory_space<vmem>>, %arg5: memref<1x128xf32, #tpu.memory_space<vmem>>, %arg6: memref<128x96xf32, #tpu.memory_space<vmem>>, %arg7: memref<2x128xf32, #tpu.memory_space<vmem>>, %arg8: memref<2x1024xf32, #tpu.memory_space<vmem>>, %arg9: memref<2x128xf32, #tpu.memory_space<vmem>>) attributes {dimension_semantics = [#tpu.dimension_semantics<parallel>, #tpu.dimension_semantics<arbitrary>], iteration_bounds = array<i64: 1, 1>, scalar_prefetch = 0 : i64, scratch_operands = 2 : i64, tpu.core_type = #tpu.core_type<tc>, window_params = [{transform_indices = @transform_0, window_bounds = array<i64: 2, 8, 1024>}, {transform_indices = @transform_1, window_bounds = array<i64: 2, 8, 128>}, {pipeline_mode = #tpu.pipeline_mode<synchronous>, transform_indices = @transform_2, window_bounds = array<i64: 1024, 128>}, {pipeline_mode = #tpu.pipeline_mode<synchronous>, transform_indices = @transform_3, window_bounds = array<i64: 1, 128>}, {pipeline_mode = #tpu.pipeline_mode<synchronous>, transform_indices = @transform_4, window_bounds = array<i64: 128, 96>}, {transform_indices = @transform_5, window_bounds = array<i64: 2, 128>}]} {
    %c0_i32 = arith.constant 0 : i32
    %0 = arith.cmpi eq, %arg1, %c0_i32 : i32
    %1 = arith.extui %0 : i1 to i32
    %c0_i32_0 = arith.constant 0 : i32
    %2 = arith.cmpi ne, %1, %c0_i32_0 : i32
    scf.if %2 {
      %cst_17 = arith.constant 0xFF800000 : f32
      %16 = vector.broadcast %cst_17 : f32 to vector<2x1024xf32>
      %c0_18 = arith.constant 0 : index
      %c0_19 = arith.constant 0 : index
      %17 = vector.load %arg8[%c0_18, %c0_19] : memref<2x1024xf32, #tpu.memory_space<vmem>>, vector<2x1024xf32>
      tpu.vector_store %arg8[%c0_18, %c0_19], %16 {strides = array<i32>} : memref<2x1024xf32, #tpu.memory_space<vmem>>, vector<2x1024xf32>,
      %cst_20 = arith.constant 0xFF800000 : f32
      %18 = vector.broadcast %cst_20 : f32 to vector<2x128xf32>
      %c0_21 = arith.constant 0 : index
      %c0_22 = arith.constant 0 : index
      %19 = vector.load %arg9[%c0_21, %c0_22] : memref<2x128xf32, #tpu.memory_space<vmem>>, vector<2x128xf32>
      tpu.vector_store %arg9[%c0_21, %c0_22], %18 {strides = array<i32>} : memref<2x128xf32, #tpu.memory_space<vmem>>, vector<2x128xf32>,
    } else {
    }
    %c0 = arith.constant 0 : index
    %c0_1 = arith.constant 0 : index
    %3 = vector.load %arg8[%c0, %c0_1] : memref<2x1024xf32, #tpu.memory_space<vmem>>, vector<2x1024xf32>
    %c0_2 = arith.constant 0 : index
    %c0_3 = arith.constant 0 : index
    %c0_4 = arith.constant 0 : index
    %4 = vector.load %arg2[%c0_2, %c0_3, %c0_4] : memref<2x8x1024xf32, #tpu.memory_space<vmem>>, vector<2x8x1024xf32>
    %cst = arith.constant dense<0xFF800000> : vector<2x1024xf32>
    %5 = vector.multi_reduction <maximumf>, %4, %cst [1] : vector<2x8x1024xf32> to vector<2x1024xf32>
    %6 = arith.maximumf %3, %5 : vector<2x1024xf32>
    %c0_5 = arith.constant 0 : index
    %c0_6 = arith.constant 0 : index
    %7 = vector.load %arg8[%c0_5, %c0_6] : memref<2x1024xf32, #tpu.memory_space<vmem>>, vector<2x1024xf32>
    tpu.vector_store %arg8[%c0_5, %c0_6], %6 {strides = array<i32>} : memref<2x1024xf32, #tpu.memory_space<vmem>>, vector<2x1024xf32>,
    %c0_7 = arith.constant 0 : index
    %c0_8 = arith.constant 0 : index
    %8 = vector.load %arg9[%c0_7, %c0_8] : memref<2x128xf32, #tpu.memory_space<vmem>>, vector<2x128xf32>
    %c0_9 = arith.constant 0 : index
    %c0_10 = arith.constant 0 : index
    %c0_11 = arith.constant 0 : index
    %9 = vector.load %arg3[%c0_9, %c0_10, %c0_11] : memref<2x8x128xf32, #tpu.memory_space<vmem>>, vector<2x8x128xf32>
    %cst_12 = arith.constant dense<0xFF800000> : vector<2x128xf32>
    %10 = vector.multi_reduction <maximumf>, %9, %cst_12 [1] : vector<2x8x128xf32> to vector<2x128xf32>
    %11 = arith.maximumf %8, %10 : vector<2x128xf32>
    %c0_13 = arith.constant 0 : index
    %c0_14 = arith.constant 0 : index
    %12 = vector.load %arg9[%c0_13, %c0_14] : memref<2x128xf32, #tpu.memory_space<vmem>>, vector<2x128xf32>
    tpu.vector_store %arg9[%c0_13, %c0_14], %11 {strides = array<i32>} : memref<2x128xf32, #tpu.memory_space<vmem>>, vector<2x128xf32>,
    %c0_i32_15 = arith.constant 0 : i32
    %13 = arith.cmpi eq, %arg1, %c0_i32_15 : i32
    %14 = arith.extui %13 : i1 to i32
    %c0_i32_16 = arith.constant 0 : i32
    %15 = arith.cmpi ne, %14, %c0_i32_16 : i32
    scf.if %15 {
      %c0_17 = arith.constant 0 : index
      %c0_18 = arith.constant 0 : index
      %16 = vector.load %arg8[%c0_17, %c0_18] : memref<2x1024xf32, #tpu.memory_space<vmem>>, vector<2x1024xf32>
      %c0_19 = arith.constant 0 : index
      %c0_20 = arith.constant 0 : index
      %17 = vector.load %arg4[%c0_19, %c0_20] : memref<1024x128xf32, #tpu.memory_space<vmem>>, vector<1024x128xf32>
      %cst_21 = arith.constant dense<0.000000e+00> : vector<2x128xf32>
      %18 = tpu.matmul %16, %17, %cst_21 {dimension_numbers = #tpu.dot_dimension_numbers<[1], [0], [0], [1], [0, 0, 1, 1], [], []>} : vector<2x1024xf32>, vector<1024x128xf32>, vector<2x128xf32> -> vector<2x128xf32>
      %c0_22 = arith.constant 0 : index
      %c0_23 = arith.constant 0 : index
      %19 = vector.load %arg5[%c0_22, %c0_23] : memref<1x128xf32, #tpu.memory_space<vmem>>, vector<1x128xf32>
      %20 = vector.broadcast %19 : vector<1x128xf32> to vector<2x128xf32>
      %21 = arith.addf %18, %20 : vector<2x128xf32>
      %cst_24 = arith.constant 0.000000e+00 : f32
      %22 = vector.broadcast %cst_24 : f32 to vector<2x128xf32>
      %23 = arith.maximumf %21, %22 : vector<2x128xf32>
      %c0_25 = arith.constant 0 : index
      %c0_26 = arith.constant 0 : index
      %24 = vector.load %arg9[%c0_25, %c0_26] : memref<2x128xf32, #tpu.memory_space<vmem>>, vector<2x128xf32>
      %25 = arith.subf %23, %24 : vector<2x128xf32>
      %c0_27 = arith.constant 0 : index
      %c0_28 = arith.constant 0 : index
      %26 = vector.load %arg6[%c0_27, %c0_28] : memref<128x96xf32, #tpu.memory_space<vmem>>, vector<128x96xf32>
      %cst_29 = arith.constant dense<0.000000e+00> : vector<2x96xf32>
      %27 = tpu.matmul %25, %26, %cst_29 {dimension_numbers = #tpu.dot_dimension_numbers<[1], [0], [0], [1], [0, 0, 1, 1], [], []>} : vector<2x128xf32>, vector<128x96xf32>, vector<2x96xf32> -> vector<2x96xf32>
      %cst_30 = arith.constant 9.99999997E-7 : f32
      %28 = vector.broadcast %cst_30 : f32 to vector<2x96xf32>
      %29 = arith.addf %27, %28 : vector<2x96xf32>
      %30 = arith.mulf %29, %29 : vector<2x96xf32>
      %cst_31 = arith.constant dense<0.000000e+00> : vector<2xf32>
      %31 = vector.multi_reduction <add>, %30, %cst_31 [1] : vector<2x96xf32> to vector<2xf32>
      %32 = vector.shape_cast %31 : vector<2xf32> to vector<2x1xf32>
      %33 = math.sqrt %32 : vector<2x1xf32>
      %34 = vector.shape_cast %33 : vector<2x1xf32> to vector<2x1xf32>
      %35 = vector.broadcast %34 : vector<2x1xf32> to vector<2x128xf32>
      %c0_32 = arith.constant 0 : index
      %c0_33 = arith.constant 0 : index
      %36 = vector.load %arg7[%c0_32, %c0_33] : memref<2x128xf32, #tpu.memory_space<vmem>>, vector<2x128xf32>
      tpu.vector_store %arg7[%c0_32, %c0_33], %35 {strides = array<i32>} : memref<2x128xf32, #tpu.memory_space<vmem>>, vector<2x128xf32>,
    } else {
    }
    return
  }
  func.func @transform_0(%arg0: i32, %arg1: i32) -> (i32, i32, i32) {
    %c0_i32 = arith.constant 0 : i32
    %c0_i32_0 = arith.constant 0 : i32
    return %arg0, %arg1, %c0_i32 : i32, i32, i32
  }
  func.func @transform_1(%arg0: i32, %arg1: i32) -> (i32, i32, i32) {
    %c0_i32 = arith.constant 0 : i32
    %c0_i32_0 = arith.constant 0 : i32
    return %arg0, %arg1, %c0_i32 : i32, i32, i32
  }
  func.func @transform_2(%arg0: i32, %arg1: i32) -> (i32, i32) {
    %c0_i32 = arith.constant 0 : i32
    %c0_i32_0 = arith.constant 0 : i32
    %c0_i32_1 = arith.constant 0 : i32
    return %c0_i32, %c0_i32_0 : i32, i32
  }
  func.func @transform_3(%arg0: i32, %arg1: i32) -> (i32, i32) {
    %c0_i32 = arith.constant 0 : i32
    %c0_i32_0 = arith.constant 0 : i32
    %c0_i32_1 = arith.constant 0 : i32
    return %c0_i32, %c0_i32_0 : i32, i32
  }
  func.func @transform_4(%arg0: i32, %arg1: i32) -> (i32, i32) {
    %c0_i32 = arith.constant 0 : i32
    %c0_i32_0 = arith.constant 0 : i32
    %c0_i32_1 = arith.constant 0 : i32
    return %c0_i32, %c0_i32_0 : i32, i32
  }
  func.func @transform_5(%arg0: i32, %arg1: i32) -> (i32, i32) {
    %c0_i32 = arith.constant 0 : i32
    %c0_i32_0 = arith.constant 0 : i32
    return %arg0, %c0_i32 : i32, i32
  }
}

</mosaic_0001>

<llo_original>
// kernel: tpu_custom_call.1
$region0: #{tpu_custom_call.1}
  #allocation0 [shape = 'u32[]', space=smem, size = 0x4, offset = 0x4, fixed_abs, tag = 'smem constant byte address 0x4 - core index']
  #allocation1 [shape = 'u32[144,128]{1,0:T(1,128)}', space=vmem, size = 0x12000, scoped, tag = 'internal scratch']
  #allocation2 [shape = 'f32[2,1024]{1,0:T(2,128)}', space=vmem, size = 0x2000, scoped, tag = 'scratch operand']
  #allocation3 [shape = 'f32[2,128]{1,0:T(2,128)}', space=vmem, size = 0x400, scoped, tag = 'scratch operand']
  %s0 = inlined_call_operand.vmem [shape: f32[2,8,1024], index: 0, kind: input, shape index: {}]
  %s1 = inlined_call_operand.vmem [shape: f32[2,8,128], index: 1, kind: input, shape index: {}]
  %s2 = inlined_call_operand.hbm [shape: f32[1024,128], index: 2, kind: input, shape index: {}]
  %s3 = inlined_call_operand.vmem [shape: f32[1,128], index: 3, kind: input, shape index: {}]
  %s4 = inlined_call_operand.vmem [shape: f32[128,96], index: 4, kind: input, shape index: {}]
  %s5 = inlined_call_operand.hbm [shape: f32[2,128], index: 5, kind: output, shape index: {}]
  %s6 = sld [smem:[#allocation0]]
  $region42: #{tpu_custom_call.1} parent=0
    _
  %s8 = ssub.s32 1, %s6
  %s9 = scalar_select 0, %s8, %s6
  $region1: #{tpu_custom_call.1} parent=0
    #allocation4 [shape = 'u8[524288]{0}', space=vmem, size = 0x80000, scoped, tag = 'input window, operand 2, single buffered']
    #allocation5 [shape = 's32[1]{0}', space=sflag, size = 0x4, scoped, tag = 'scoped memory for tpu_custom_call.1']
    #allocation6 [shape = 's32[1]{0}', space=sflag, size = 0x4, scoped, tag = 'scoped memory for tpu_custom_call.1']
    #allocation7 [shape = 'u8[1024]{0}', space=vmem, size = 0x400, scoped, tag = 'output window, operand 0, single buffered']
    %10 = vsyncpa [#allocation5], 0
    %11 = vsyncpa [#allocation6], 0
    // Predicated region
    $region2: #{tpu_custom_call.1} parent=1 // pred_check
      _
    $region3: #{tpu_custom_call.1} parent=1 // pred_check_branch
      %13 = sbr.rel (0) target = $region5
    $region4: #{tpu_custom_call.1} parent=1 // pred_region
      _
    $region5: #{tpu_custom_call.1} parent=1 // pred_fallthru
      _
    // Predicated region
    $region6: #{tpu_custom_call.1} parent=1 // pred_check
      _
    $region7: #{tpu_custom_call.1} parent=1 // pred_check_branch
      %15 = sbr.rel (0) target = $region9
    $region8: #{tpu_custom_call.1} parent=1 // pred_region
      _
    $region9: #{tpu_custom_call.1} parent=1 // pred_fallthru
      _
    // Predicated region
    $region10: #{tpu_custom_call.1} parent=1 // pred_check
      _
    $region11: #{tpu_custom_call.1} parent=1 // pred_check_branch
      %17 = sbr.rel (0) target = $region13
    $region12: #{tpu_custom_call.1} parent=1 // pred_region
      %s19 = ssub.s32 16384, 16384
      %20 = vsyncadd [#allocation5], %s19
      %s21 = sshll.u32 [#allocation4], 4
      %s22 = int_to_ptr.vmem [resolvable:$true] %s21
      %27 = dma.hbm_to_vmem [thread:$0]  %s2, 16384, %s22, [#allocation5], 128, 128, 8
    $region13: #{tpu_custom_call.1} parent=1 // pred_fallthru
      _
    // Predicated region
    $region14: #{tpu_custom_call.1} parent=1 // pred_check
      _
    $region15: #{tpu_custom_call.1} parent=1 // pred_check_branch
      %29 = sbr.rel (0) target = $region17
    $region16: #{tpu_custom_call.1} parent=1 // pred_region
      _
    $region17: #{tpu_custom_call.1} parent=1 // pred_fallthru
      _
    // Predicated region
    $region18: #{tpu_custom_call.1} parent=1 // pred_check
      _
    $region19: #{tpu_custom_call.1} parent=1 // pred_check_branch
      %31 = sbr.rel (0) target = $region21
    $region20: #{tpu_custom_call.1} parent=1 // pred_region
      _
    $region21: #{tpu_custom_call.1} parent=1 // pred_fallthru
      _
    // Predicated region
    $region22: #{tpu_custom_call.1} parent=1 // pred_check
      _
    $region23: #{tpu_custom_call.1} parent=1 // pred_check_branch
      %33 = sbr.rel (0) target = $region25
    $region24: #{tpu_custom_call.1} parent=1 // pred_region
      %34 = dma.done [#allocation5], 16384
    $region25: #{tpu_custom_call.1} parent=1 // pred_fallthru
      _
    %p35 = scmp.eq.s32.totalorder 0, 0
    // Predicated region
    $region26: #{tpu_custom_call.1} parent=1 // pred_check
      %p36 = pneg %p35
    $region27: #{tpu_custom_call.1} parent=1 // pred_check_branch
      %38 = sbr.rel (%p36) target = $region29
    $region28: #{tpu_custom_call.1} parent=1 // pred_region
      %39 = vst [vmem:[#allocation2] sm:$0xff] -inf
      %40 = vst [vmem:[#allocation2 + $0x8] sm:$0xff] -inf
      %41 = vst [vmem:[#allocation3] sm:$0x3] -inf
    $region29: #{tpu_custom_call.1} parent=1 // pred_fallthru
      _
    %v42 = vld [vmem:[#allocation2] sm:$0xff]
    %v43 = vld [vmem:[#allocation2 + $0x8] sm:$0xff]
    %v44 = vld [vmem:[%s0] sm:$0xff]
    %v45 = vld [vmem:[%s0 + $0x8] sm:$0xff]
    %v46 = vld [vmem:[%s0 + $0x10] sm:$0xff]
    %v47 = vld [vmem:[%s0 + $0x18] sm:$0xff]
    %v48 = vld [vmem:[%s0 + $0x20] sm:$0xff]
    %v49 = vld [vmem:[%s0 + $0x28] sm:$0xff]
    %v50 = vld [vmem:[%s0 + $0x30] sm:$0xff]
    %v51 = vld [vmem:[%s0 + $0x38] sm:$0xff]
    %v52 = vld [vmem:[%s0 + $0x40] sm:$0xff]
    %v53 = vld [vmem:[%s0 + $0x48] sm:$0xff]
    %v54 = vld [vmem:[%s0 + $0x50] sm:$0xff]
    %v55 = vld [vmem:[%s0 + $0x58] sm:$0xff]
    %v56 = vld [vmem:[%s0 + $0x60] sm:$0xff]
    %v57 = vld [vmem:[%s0 + $0x68] sm:$0xff]
    %v58 = vld [vmem:[%s0 + $0x70] sm:$0xff]
    %v59 = vld [vmem:[%s0 + $0x78] sm:$0xff]
    %v60 = vrot.slane %v44, 4
    %v61 = vmax.f32 %v44, %v60
    %v62 = vrot.slane %v61, 2
    %v63 = vmax.f32 %v61, %v62
    %v64 = vrot.slane %v63, 1
    %v65 = vmax.f32 %v63, %v64
    %v66 = vrot.slane %v45, 4
    %v67 = vmax.f32 %v45, %v66
    %v68 = vrot.slane %v67, 2
    %v69 = vmax.f32 %v67, %v68
    %v70 = vrot.slane %v69, 1
    %v71 = vmax.f32 %v69, %v70
    %v72 = vrot.slane %v46, 4
    %v73 = vmax.f32 %v46, %v72
    %v74 = vrot.slane %v73, 2
    %v75 = vmax.f32 %v73, %v74
    %v76 = vrot.slane %v75, 1
    %v77 = vmax.f32 %v75, %v76
    %v78 = vrot.slane %v47, 4
    %v79 = vmax.f32 %v47, %v78
    %v80 = vrot.slane %v79, 2
    %v81 = vmax.f32 %v79, %v80
    %v82 = vrot.slane %v81, 1
    %v83 = vmax.f32 %v81, %v82
    %v84 = vrot.slane %v48, 4
    %v85 = vmax.f32 %v48, %v84
    %v86 = vrot.slane %v85, 2
    %v87 = vmax.f32 %v85, %v86
    %v88 = vrot.slane %v87, 1
    %v89 = vmax.f32 %v87, %v88
    %v90 = vrot.slane %v49, 4
    %v91 = vmax.f32 %v49, %v90
    %v92 = vrot.slane %v91, 2
    %v93 = vmax.f32 %v91, %v92
    %v94 = vrot.slane %v93, 1
    %v95 = vmax.f32 %v93, %v94
    %v96 = vrot.slane %v50, 4
    %v97 = vmax.f32 %v50, %v96
    %v98 = vrot.slane %v97, 2
    %v99 = vmax.f32 %v97, %v98
    %v100 = vrot.slane %v99, 1
    %v101 = vmax.f32 %v99, %v100
    %v102 = vrot.slane %v51, 4
    %v103 = vmax.f32 %v51, %v102
    %v104 = vrot.slane %v103, 2
    %v105 = vmax.f32 %v103, %v104
    %v106 = vrot.slane %v105, 1
    %v107 = vmax.f32 %v105, %v106
    %v108 = vrot.slane %v52, 4
    %v109 = vmax.f32 %v52, %v108
    %v110 = vrot.slane %v109, 2
    %v111 = vmax.f32 %v109, %v110
    %v112 = vrot.slane %v111, 1
    %v113 = vmax.f32 %v111, %v112
    %v114 = vrot.slane %v53, 4
    %v115 = vmax.f32 %v53, %v114
    %v116 = vrot.slane %v115, 2
    %v117 = vmax.f32 %v115, %v116
    %v118 = vrot.slane %v117, 1
    %v119 = vmax.f32 %v117, %v118
    %v120 = vrot.slane %v54, 4
    %v121 = vmax.f32 %v54, %v120
    %v122 = vrot.slane %v121, 2
    %v123 = vmax.f32 %v121, %v122
    %v124 = vrot.slane %v123, 1
    %v125 = vmax.f32 %v123, %v124
    %v126 = vrot.slane %v55, 4
    %v127 = vmax.f32 %v55, %v126
    %v128 = vrot.slane %v127, 2
    %v129 = vmax.f32 %v127, %v128
    %v130 = vrot.slane %v129, 1
    %v131 = vmax.f32 %v129, %v130
    %v132 = vrot.slane %v56, 4
    %v133 = vmax.f32 %v56, %v132
    %v134 = vrot.slane %v133, 2
    %v135 = vmax.f32 %v133, %v134
    %v136 = vrot.slane %v135, 1
    %v137 = vmax.f32 %v135, %v136
    %v138 = vrot.slane %v57, 4
    %v139 = vmax.f32 %v57, %v138
    %v140 = vrot.slane %v139, 2
    %v141 = vmax.f32 %v139, %v140
    %v142 = vrot.slane %v141, 1
    %v143 = vmax.f32 %v141, %v142
    %v144 = vrot.slane %v58, 4
    %v145 = vmax.f32 %v58, %v144
    %v146 = vrot.slane %v145, 2
    %v147 = vmax.f32 %v145, %v146
    %v148 = vrot.slane %v147, 1
    %v149 = vmax.f32 %v147, %v148
    %v150 = vrot.slane %v59, 4
    %v151 = vmax.f32 %v59, %v150
    %v152 = vrot.slane %v151, 2
    %v153 = vmax.f32 %v151, %v152
    %v154 = vrot.slane %v153, 1
    %v155 = vmax.f32 %v153, %v154
    %v172 = vcombine.low %v65, %v71
    %v173 = vcombine.low %v77, %v83
    %v175 = vunpack.c.l.s4 1983009808
    %v176 = vunpack.c.0.s8 %v175
    %v177 = vlaneseq
    %v178 = vshrl.u32 %v177, 7
    %v179 = vsub.s32 %v176, %v178
    %v180 = vrot.slane %v172, %v179
    %v182 = vunpack.c.l.s4 1983009808
    %v183 = vunpack.c.0.s8 %v182
    %v184 = vlaneseq
    %v185 = vshrl.u32 %v184, 7
    %v186 = vsub.s32 %v183, %v185
    %v187 = vrot.slane %v173, %v186
    %v188 = vcombine.low %v180, %v187
    %v189 = vcombine.low %v89, %v95
    %v190 = vcombine.low %v101, %v107
    %v192 = vunpack.c.l.s4 1983009808
    %v193 = vunpack.c.0.s8 %v192
    %v194 = vlaneseq
    %v195 = vshrl.u32 %v194, 7
    %v196 = vsub.s32 %v193, %v195
    %v197 = vrot.slane %v189, %v196
    %v199 = vunpack.c.l.s4 1983009808
    %v200 = vunpack.c.0.s8 %v199
    %v201 = vlaneseq
    %v202 = vshrl.u32 %v201, 7
    %v203 = vsub.s32 %v200, %v202
    %v204 = vrot.slane %v190, %v203
    %v205 = vcombine.low %v197, %v204
    %v206 = vcombine.low %v113, %v119
    %v207 = vcombine.low %v125, %v131
    %v209 = vunpack.c.l.s4 1983009808
    %v210 = vunpack.c.0.s8 %v209
    %v211 = vlaneseq
    %v212 = vshrl.u32 %v211, 7
    %v213 = vsub.s32 %v210, %v212
    %v214 = vrot.slane %v206, %v213
    %v216 = vunpack.c.l.s4 1983009808
    %v217 = vunpack.c.0.s8 %v216
    %v218 = vlaneseq
    %v219 = vshrl.u32 %v218, 7
    %v220 = vsub.s32 %v217, %v219
    %v221 = vrot.slane %v207, %v220
    %v222 = vcombine.low %v214, %v221
    %v223 = vcombine.low %v137, %v143
    %v224 = vcombine.low %v149, %v155
    %v226 = vunpack.c.l.s4 1983009808
    %v227 = vunpack.c.0.s8 %v226
    %v228 = vlaneseq
    %v229 = vshrl.u32 %v228, 7
    %v230 = vsub.s32 %v227, %v229
    %v231 = vrot.slane %v223, %v230
    %v233 = vunpack.c.l.s4 1983009808
    %v234 = vunpack.c.0.s8 %v233
    %v235 = vlaneseq
    %v236 = vshrl.u32 %v235, 7
    %v237 = vsub.s32 %v234, %v236
    %v238 = vrot.slane %v224, %v237
    %v239 = vcombine.low %v231, %v238
    %vm240 = vcmask 1044484
    %v241 = vsel %vm240, %v188, %v188
    %vm242 = vcmask 1046534
    %v243 = vsel %vm242, %v188, %v241
    %v244 = vrot.slane %v222, 7
    %vm245 = vcmask 1041409
    %v246 = vsel %vm245, %v244, %v243
    %vm247 = vcmask 1043459
    %v248 = vsel %vm247, %v244, %v246
    %vm249 = vcmask 1045509
    %v250 = vsel %vm249, %v244, %v248
    %vm251 = vcmask 1047559
    %v252 = vsel %vm251, %v244, %v250
    %v253 = vsel %vm240, %v205, %v205
    %v254 = vsel %vm242, %v205, %v253
    %v255 = vrot.slane %v239, 7
    %v256 = vsel %vm245, %v255, %v254
    %v257 = vsel %vm247, %v255, %v256
    %v258 = vsel %vm249, %v255, %v257
    %v259 = vsel %vm251, %v255, %v258
    %v262 = vmax.f32 %v42, %v252
    %v263 = vmax.f32 %v43, %v259
    %264 = vst [vmem:[#allocation2] sm:$0xff] %v262
    %265 = vst [vmem:[#allocation2 + $0x8] sm:$0xff] %v263
    %v266 = vld [vmem:[#allocation3] sm:$0x3]
    %v267 = vld [vmem:[%s1] sm:$0xff]
    %v268 = vld [vmem:[%s1 + $0x8] sm:$0xff]
    %v269 = vrot.slane %v267, 4
    %v270 = vmax.f32 %v267, %v269
    %v271 = vrot.slane %v270, 2
    %v272 = vmax.f32 %v270, %v271
    %v273 = vrot.slane %v272, 1
    %v274 = vmax.f32 %v272, %v273
    %v275 = vrot.slane %v268, 4
    %v276 = vmax.f32 %v268, %v275
    %v277 = vrot.slane %v276, 2
    %v278 = vmax.f32 %v276, %v277
    %v279 = vrot.slane %v278, 1
    %v280 = vmax.f32 %v278, %v279
    %v283 = vsel %vm245, %v280, %v274
    %v285 = vmax.f32 %v266, %v283
    %286 = vst [vmem:[#allocation3] sm:$0x3] %v285
    // Predicated region
    $region30: #{tpu_custom_call.1} parent=1 // pred_check
      %p287 = pneg %p35
    $region31: #{tpu_custom_call.1} parent=1 // pred_check_branch
      %289 = sbr.rel (%p287) target = $region33
    $region32: #{tpu_custom_call.1} parent=1 // pred_region
      %v290 = vld [vmem:[#allocation2] sm:$0xff]
      %v291 = vld [vmem:[#allocation2 + $0x8] sm:$0xff]
      %v292 = vld [vmem:[#allocation4] sm:$0xff]
      %v293 = vld [vmem:[#allocation4 + $0x8] sm:$0xff]
      %v294 = vld [vmem:[#allocation4 + $0x10] sm:$0xff]
      %v295 = vld [vmem:[#allocation4 + $0x18] sm:$0xff]
      %v296 = vld [vmem:[#allocation4 + $0x20] sm:$0xff]
      %v297 = vld [vmem:[#allocation4 + $0x28] sm:$0xff]
      %v298 = vld [vmem:[#allocation4 + $0x30] sm:$0xff]
      %v299 = vld [vmem:[#allocation4 + $0x38] sm:$0xff]
      %v300 = vld [vmem:[#allocation4 + $0x40] sm:$0xff]
      %v301 = vld [vmem:[#allocation4 + $0x48] sm:$0xff]
      %v302 = vld [vmem:[#allocation4 + $0x50] sm:$0xff]
      %v303 = vld [vmem:[#allocation4 + $0x58] sm:$0xff]
      %v304 = vld [vmem:[#allocation4 + $0x60] sm:$0xff]
      %v305 = vld [vmem:[#allocation4 + $0x68] sm:$0xff]
      %v306 = vld [vmem:[#allocation4 + $0x70] sm:$0xff]
      %v307 = vld [vmem:[#allocation4 + $0x78] sm:$0xff]
      %v308 = vld [vmem:[#allocation4 + $0x80] sm:$0xff]
      %v309 = vld [vmem:[#allocation4 + $0x88] sm:$0xff]
      %v310 = vld [vmem:[#allocation4 + $0x90] sm:$0xff]
      %v311 = vld [vmem:[#allocation4 + $0x98] sm:$0xff]
      %v312 = vld [vmem:[#allocation4 + $0xa0] sm:$0xff]
      %v313 = vld [vmem:[#allocation4 + $0xa8] sm:$0xff]
      %v314 = vld [vmem:[#allocation4 + $0xb0] sm:$0xff]
      %v315 = vld [vmem:[#allocation4 + $0xb8] sm:$0xff]
      %v316 = vld [vmem:[#allocation4 + $0xc0] sm:$0xff]
      %v317 = vld [vmem:[#allocation4 + $0xc8] sm:$0xff]
      %v318 = vld [vmem:[#allocation4 + $0xd0] sm:$0xff]
      %v319 = vld [vmem:[#allocation4 + $0xd8] sm:$0xff]
      %v320 = vld [vmem:[#allocation4 + $0xe0] sm:$0xff]
      %v321 = vld [vmem:[#allocation4 + $0xe8] sm:$0xff]
      %v322 = vld [vmem:[#allocation4 + $0xf0] sm:$0xff]
      %v323 = vld [vmem:[#allocation4 + $0xf8] sm:$0xff]
      %v324 = vld [vmem:[#allocation4 + $0x100] sm:$0xff]
      %v325 = vld [vmem:[#allocation4 + $0x108] sm:$0xff]
      %v326 = vld [vmem:[#allocation4 + $0x110] sm:$0xff]
      %v327 = vld [vmem:[#allocation4 + $0x118] sm:$0xff]
      %v328 = vld [vmem:[#allocation4 + $0x120] sm:$0xff]
      %v329 = vld [vmem:[#allocation4 + $0x128] sm:$0xff]
      %v330 = vld [vmem:[#allocation4 + $0x130] sm:$0xff]
      %v331 = vld [vmem:[#allocation4 + $0x138] sm:$0xff]
      %v332 = vld [vmem:[#allocation4 + $0x140] sm:$0xff]
      %v333 = vld [vmem:[#allocation4 + $0x148] sm:$0xff]
      %v334 = vld [vmem:[#allocation4 + $0x150] sm:$0xff]
      %v335 = vld [vmem:[#allocation4 + $0x158] sm:$0xff]
      %v336 = vld [vmem:[#allocation4 + $0x160] sm:$0xff]
      %v337 = vld [vmem:[#allocation4 + $0x168] sm:$0xff]
      %v338 = vld [vmem:[#allocation4 + $0x170] sm:$0xff]
      %v339 = vld [vmem:[#allocation4 + $0x178] sm:$0xff]
      %v340 = vld [vmem:[#allocation4 + $0x180] sm:$0xff]
      %v341 = vld [vmem:[#allocation4 + $0x188] sm:$0xff]
      %v342 = vld [vmem:[#allocation4 + $0x190] sm:$0xff]
      %v343 = vld [vmem:[#allocation4 + $0x198] sm:$0xff]
      %v344 = vld [vmem:[#allocation4 + $0x1a0] sm:$0xff]
      %v345 = vld [vmem:[#allocation4 + $0x1a8] sm:$0xff]
      %v346 = vld [vmem:[#allocation4 + $0x1b0] sm:$0xff]
      %v347 = vld [vmem:[#allocation4 + $0x1b8] sm:$0xff]
      %v348 = vld [vmem:[#allocation4 + $0x1c0] sm:$0xff]
      %v349 = vld [vmem:[#allocation4 + $0x1c8] sm:$0xff]
      %v350 = vld [vmem:[#allocation4 + $0x1d0] sm:$0xff]
      %v351 = vld [vmem:[#allocation4 + $0x1d8] sm:$0xff]
      %v352 = vld [vmem:[#allocation4 + $0x1e0] sm:$0xff]
      %v353 = vld [vmem:[#allocation4 + $0x1e8] sm:$0xff]
      %v354 = vld [vmem:[#allocation4 + $0x1f0] sm:$0xff]
      %v355 = vld [vmem:[#allocation4 + $0x1f8] sm:$0xff]
      %v356 = vld [vmem:[#allocation4 + $0x200] sm:$0xff]
      %v357 = vld [vmem:[#allocation4 + $0x208] sm:$0xff]
      %v358 = vld [vmem:[#allocation4 + $0x210] sm:$0xff]
      %v359 = vld [vmem:[#allocation4 + $0x218] sm:$0xff]
      %v360 = vld [vmem:[#allocation4 + $0x220] sm:$0xff]
      %v361 = vld [vmem:[#allocation4 + $0x228] sm:$0xff]
      %v362 = vld [vmem:[#allocation4 + $0x230] sm:$0xff]
      %v363 = vld [vmem:[#allocation4 + $0x238] sm:$0xff]
      %v364 = vld [vmem:[#allocation4 + $0x240] sm:$0xff]
      %v365 = vld [vmem:[#allocation4 + $0x248] sm:$0xff]
      %v366 = vld [vmem:[#allocation4 + $0x250] sm:$0xff]
      %v367 = vld [vmem:[#allocation4 + $0x258] sm:$0xff]
      %v368 = vld [vmem:[#allocation4 + $0x260] sm:$0xff]
      %v369 = vld [vmem:[#allocation4 + $0x268] sm:$0xff]
      %v370 = vld [vmem:[#allocation4 + $0x270] sm:$0xff]
      %v371 = vld [vmem:[#allocation4 + $0x278] sm:$0xff]
      %v372 = vld [vmem:[#allocation4 + $0x280] sm:$0xff]
      %v373 = vld [vmem:[#allocation4 + $0x288] sm:$0xff]
      %v374 = vld [vmem:[#allocation4 + $0x290] sm:$0xff]
      %v375 = vld [vmem:[#allocation4 + $0x298] sm:$0xff]
      %v376 = vld [vmem:[#allocation4 + $0x2a0] sm:$0xff]
      %v377 = vld [vmem:[#allocation4 + $0x2a8] sm:$0xff]
      %v378 = vld [vmem:[#allocation4 + $0x2b0] sm:$0xff]
      %v379 = vld [vmem:[#allocation4 + $0x2b8] sm:$0xff]
      %v380 = vld [vmem:[#allocation4 + $0x2c0] sm:$0xff]
      %v381 = vld [vmem:[#allocation4 + $0x2c8] sm:$0xff]
      %v382 = vld [vmem:[#allocation4 + $0x2d0] sm:$0xff]
      %v383 = vld [vmem:[#allocation4 + $0x2d8] sm:$0xff]
      %v384 = vld [vmem:[#allocation4 + $0x2e0] sm:$0xff]
      %v385 = vld [vmem:[#allocation4 + $0x2e8] sm:$0xff]
      %v386 = vld [vmem:[#allocation4 + $0x2f0] sm:$0xff]
      %v387 = vld [vmem:[#allocation4 + $0x2f8] sm:$0xff]
      %v388 = vld [vmem:[#allocation4 + $0x300] sm:$0xff]
      %v389 = vld [vmem:[#allocation4 + $0x308] sm:$0xff]
      %v390 = vld [vmem:[#allocation4 + $0x310] sm:$0xff]
      %v391 = vld [vmem:[#allocation4 + $0x318] sm:$0xff]
      %v392 = vld [vmem:[#allocation4 + $0x320] sm:$0xff]
      %v393 = vld [vmem:[#allocation4 + $0x328] sm:$0xff]
      %v394 = vld [vmem:[#allocation4 + $0x330] sm:$0xff]
      %v395 = vld [vmem:[#allocation4 + $0x338] sm:$0xff]
      %v396 = vld [vmem:[#allocation4 + $0x340] sm:$0xff]
      %v397 = vld [vmem:[#allocation4 + $0x348] sm:$0xff]
      %v398 = vld [vmem:[#allocation4 + $0x350] sm:$0xff]
      %v399 = vld [vmem:[#allocation4 + $0x358] sm:$0xff]
      %v400 = vld [vmem:[#allocation4 + $0x360] sm:$0xff]
      %v401 = vld [vmem:[#allocation4 + $0x368] sm:$0xff]
      %v402 = vld [vmem:[#allocation4 + $0x370] sm:$0xff]
      %v403 = vld [vmem:[#allocation4 + $0x378] sm:$0xff]
      %v404 = vld [vmem:[#allocation4 + $0x380] sm:$0xff]
      %v405 = vld [vmem:[#allocation4 + $0x388] sm:$0xff]
      %v406 = vld [vmem:[#allocation4 + $0x390] sm:$0xff]
      %v407 = vld [vmem:[#allocation4 + $0x398] sm:$0xff]
      %v408 = vld [vmem:[#allocation4 + $0x3a0] sm:$0xff]
      %v409 = vld [vmem:[#allocation4 + $0x3a8] sm:$0xff]
      %v410 = vld [vmem:[#allocation4 + $0x3b0] sm:$0xff]
      %v411 = vld [vmem:[#allocation4 + $0x3b8] sm:$0xff]
      %v412 = vld [vmem:[#allocation4 + $0x3c0] sm:$0xff]
      %v413 = vld [vmem:[#allocation4 + $0x3c8] sm:$0xff]
      %v414 = vld [vmem:[#allocation4 + $0x3d0] sm:$0xff]
      %v415 = vld [vmem:[#allocation4 + $0x3d8] sm:$0xff]
      %v416 = vld [vmem:[#allocation4 + $0x3e0] sm:$0xff]
      %v417 = vld [vmem:[#allocation4 + $0x3e8] sm:$0xff]
      %v418 = vld [vmem:[#allocation4 + $0x3f0] sm:$0xff]
      %v419 = vld [vmem:[#allocation4 + $0x3f8] sm:$0xff]
      %v420 = vld [vmem:[%s3] sm:$0x1]
      %v422 = vlaneseq
      %v423 = vshrl.u32 %v422, 7
      %v424 = vsub.s32 0, %v423
      %v425 = vrot.slane %v420, %v424
      %v429 = vcombine.high %v290, %v290
      %v431 = vunpack.c.l.s4 1983009808
      %v432 = vunpack.c.0.s8 %v431
      %v433 = vlaneseq
      %v434 = vshrl.u32 %v433, 7
      %v435 = vsub.s32 %v432, %v434
      %v436 = vrot.slane %v290, %v435
      %v438 = vunpack.c.l.s4 1983009808
      %v439 = vunpack.c.0.s8 %v438
      %v440 = vlaneseq
      %v441 = vshrl.u32 %v440, 7
      %v442 = vsub.s32 %v439, %v441
      %v443 = vrot.slane %v429, %v442
      %v444 = vcombine.high %v436, %v436
      %v445 = vcombine.high %v443, %v443
      %v446 = vcombine.high %v291, %v291
      %v448 = vunpack.c.l.s4 1983009808
      %v449 = vunpack.c.0.s8 %v448
      %v450 = vlaneseq
      %v451 = vshrl.u32 %v450, 7
      %v452 = vsub.s32 %v449, %v451
      %v453 = vrot.slane %v291, %v452
      %v455 = vunpack.c.l.s4 1983009808
      %v456 = vunpack.c.0.s8 %v455
      %v457 = vlaneseq
      %v458 = vshrl.u32 %v457, 7
      %v459 = vsub.s32 %v456, %v458
      %v460 = vrot.slane %v446, %v459
      %v461 = vcombine.high %v453, %v453
      %v462 = vcombine.high %v460, %v460
      %471 = vmatprep.subr.mxu0 0.0
      %472 = vmatpush1.msra.mxu0 %v292
      %473 = vmatprep.subr.mxu0 0.0
      %474 = vmatpush1.msra.mxu0 %v293
      %475 = vmatprep.subr.mxu0 0.0
      %476 = vmatpush1.msra.mxu0 %v294
      %477 = vmatprep.subr.mxu0 0.0
      %478 = vmatpush1.msra.mxu0 %v295
      %479 = vmatprep.subr.mxu0 0.0
      %480 = vmatpush1.msra.mxu0 %v296
      %481 = vmatprep.subr.mxu0 0.0
      %482 = vmatpush1.msra.mxu0 %v297
      %483 = vmatprep.subr.mxu0 0.0
      %484 = vmatpush1.msra.mxu0 %v298
      %485 = vmatprep.subr.mxu0 0.0
      %486 = vmatpush1.msra.mxu0 %v299
      %487 = vmatprep.subr.mxu0 0.0
      %488 = vmatpush1.msra.mxu0 %v300
      %489 = vmatprep.subr.mxu0 0.0
      %490 = vmatpush1.msra.mxu0 %v301
      %491 = vmatprep.subr.mxu0 0.0
      %492 = vmatpush1.msra.mxu0 %v302
      %493 = vmatprep.subr.mxu0 0.0
      %494 = vmatpush1.msra.mxu0 %v303
      %495 = vmatprep.subr.mxu0 0.0
      %496 = vmatpush1.msra.mxu0 %v304
      %497 = vmatprep.subr.mxu0 0.0
      %498 = vmatpush1.msra.mxu0 %v305
      %499 = vmatprep.subr.mxu0 0.0
      %500 = vmatpush1.msra.mxu0 %v306
      %501 = vmatprep.subr.mxu0 0.0
      %502 = vmatpush1.msra.mxu0 %v307
      %503 = vmatprep.subr.mxu0 0.0
      %504 = vmatpush1.msra.mxu0 %v308
      %505 = vmatprep.subr.mxu0 0.0
      %506 = vmatpush1.msra.mxu0 %v309
      %507 = vmatprep.subr.mxu0 0.0
      %508 = vmatpush1.msra.mxu0 %v310
      %509 = vmatprep.subr.mxu0 0.0
      %510 = vmatpush1.msra.mxu0 %v311
      %511 = vmatprep.subr.mxu0 0.0
      %512 = vmatpush1.msra.mxu0 %v312
      %513 = vmatprep.subr.mxu0 0.0
      %514 = vmatpush1.msra.mxu0 %v313
      %515 = vmatprep.subr.mxu0 0.0
      %516 = vmatpush1.msra.mxu0 %v314
      %517 = vmatprep.subr.mxu0 0.0
      %518 = vmatpush1.msra.mxu0 %v315
      %519 = vmatprep.subr.mxu0 0.0
      %520 = vmatpush1.msra.mxu0 %v316
      %521 = vmatprep.subr.mxu0 0.0
      %522 = vmatpush1.msra.mxu0 %v317
      %523 = vmatprep.subr.mxu0 0.0
      %524 = vmatpush1.msra.mxu0 %v318
      %525 = vmatprep.subr.mxu0 0.0
      %526 = vmatpush1.msra.mxu0 %v319
      %527 = vmatprep.subr.mxu0 0.0
      %528 = vmatpush1.msra.mxu0 %v320
      %529 = vmatprep.subr.mxu0 0.0
      %530 = vmatpush1.msra.mxu0 %v321
      %531 = vmatprep.subr.mxu0 0.0
      %532 = vmatpush1.msra.mxu0 %v322
      %533 = vmatprep.subr.mxu0 0.0
      %534 = vmatpush1.msra.mxu0 %v323
      %535 = vmatprep.mubr.f32.mxu0 %v444
      %536 = vmatmul.mubr.f32.gmra.mrb[0].mxu0 %v436
      %v537 = vpop.f32.mrb[0].mxu0
      %v538 = vadd.f32 %v425, %v537
      %v539 = vpop.f32.mrb[0].mxu0
      %540 = vdwg.mxu0
      %541 = vmatprep.subr.mxu0 0.0
      %542 = vmatpush1.msra.mxu0 %v324
      %543 = vmatprep.subr.mxu0 0.0
      %544 = vmatpush1.msra.mxu0 %v325
      %545 = vmatprep.subr.mxu0 0.0
      %546 = vmatpush1.msra.mxu0 %v326
      %547 = vmatprep.subr.mxu0 0.0
      %548 = vmatpush1.msra.mxu0 %v327
      %549 = vmatprep.subr.mxu0 0.0
      %550 = vmatpush1.msra.mxu0 %v328
      %551 = vmatprep.subr.mxu0 0.0
      %552 = vmatpush1.msra.mxu0 %v329
      %553 = vmatprep.subr.mxu0 0.0
      %554 = vmatpush1.msra.mxu0 %v330
      %555 = vmatprep.subr.mxu0 0.0
      %556 = vmatpush1.msra.mxu0 %v331
      %557 = vmatprep.subr.mxu0 0.0
      %558 = vmatpush1.msra.mxu0 %v332
      %559 = vmatprep.subr.mxu0 0.0
      %560 = vmatpush1.msra.mxu0 %v333
      %561 = vmatprep.subr.mxu0 0.0
      %562 = vmatpush1.msra.mxu0 %v334
      %563 = vmatprep.subr.mxu0 0.0
      %564 = vmatpush1.msra.mxu0 %v335
      %565 = vmatprep.subr.mxu0 0.0
      %566 = vmatpush1.msra.mxu0 %v336
      %567 = vmatprep.subr.mxu0 0.0
      %568 = vmatpush1.msra.mxu0 %v337
      %569 = vmatprep.subr.mxu0 0.0
      %570 = vmatpush1.msra.mxu0 %v338
      %571 = vmatprep.subr.mxu0 0.0
      %572 = vmatpush1.msra.mxu0 %v339
      %573 = vmatprep.subr.mxu0 0.0
      %574 = vmatpush1.msra.mxu0 %v340
      %575 = vmatprep.subr.mxu0 0.0
      %576 = vmatpush1.msra.mxu0 %v341
      %577 = vmatprep.subr.mxu0 0.0
      %578 = vmatpush1.msra.mxu0 %v342
      %579 = vmatprep.subr.mxu0 0.0
      %580 = vmatpush1.msra.mxu0 %v343
      %581 = vmatprep.subr.mxu0 0.0
      %582 = vmatpush1.msra.mxu0 %v344
      %583 = vmatprep.subr.mxu0 0.0
      %584 = vmatpush1.msra.mxu0 %v345
      %585 = vmatprep.subr.mxu0 0.0
      %586 = vmatpush1.msra.mxu0 %v346
      %587 = vmatprep.subr.mxu0 0.0
      %588 = vmatpush1.msra.mxu0 %v347
      %589 = vmatprep.subr.mxu0 0.0
      %590 = vmatpush1.msra.mxu0 %v348
      %591 = vmatprep.subr.mxu0 0.0
      %592 = vmatpush1.msra.mxu0 %v349
      %593 = vmatprep.subr.mxu0 0.0
      %594 = vmatpush1.msra.mxu0 %v350
      %595 = vmatprep.subr.mxu0 0.0
      %596 = vmatpush1.msra.mxu0 %v351
      %597 = vmatprep.subr.mxu0 0.0
      %598 = vmatpush1.msra.mxu0 %v352
      %599 = vmatprep.subr.mxu0 0.0
      %600 = vmatpush1.msra.mxu0 %v353
      %601 = vmatprep.subr.mxu0 0.0
      %602 = vmatpush1.msra.mxu0 %v354
      %603 = vmatprep.subr.mxu0 0.0
      %604 = vmatpush1.msra.mxu0 %v355
      %605 = vmatprep.mubr.f32.mxu0 %v445
      %606 = vmatmul.mubr.f32.gmra.mrb[0].mxu0 %v443
      %v607 = vpop.f32.mrb[0].mxu0
      %v608 = vadd.f32 %v538, %v607
      %v609 = vpop.f32.mrb[0].mxu0
      %610 = vdwg.mxu0
      %611 = vmatprep.subr.mxu0 0.0
      %612 = vmatpush1.msra.mxu0 %v356
      %613 = vmatprep.subr.mxu0 0.0
      %614 = vmatpush1.msra.mxu0 %v357
      %615 = vmatprep.subr.mxu0 0.0
      %616 = vmatpush1.msra.mxu0 %v358
      %617 = vmatprep.subr.mxu0 0.0
      %618 = vmatpush1.msra.mxu0 %v359
      %619 = vmatprep.subr.mxu0 0.0
      %620 = vmatpush1.msra.mxu0 %v360
      %621 = vmatprep.subr.mxu0 0.0
      %622 = vmatpush1.msra.mxu0 %v361
      %623 = vmatprep.subr.mxu0 0.0
      %624 = vmatpush1.msra.mxu0 %v362
      %625 = vmatprep.subr.mxu0 0.0
      %626 = vmatpush1.msra.mxu0 %v363
      %627 = vmatprep.subr.mxu0 0.0
      %628 = vmatpush1.msra.mxu0 %v364
      %629 = vmatprep.subr.mxu0 0.0
      %630 = vmatpush1.msra.mxu0 %v365
      %631 = vmatprep.subr.mxu0 0.0
      %632 = vmatpush1.msra.mxu0 %v366
      %633 = vmatprep.subr.mxu0 0.0
      %634 = vmatpush1.msra.mxu0 %v367
      %635 = vmatprep.subr.mxu0 0.0
      %636 = vmatpush1.msra.mxu0 %v368
      %637 = vmatprep.subr.mxu0 0.0
      %638 = vmatpush1.msra.mxu0 %v369
      %639 = vmatprep.subr.mxu0 0.0
      %640 = vmatpush1.msra.mxu0 %v370
      %641 = vmatprep.subr.mxu0 0.0
      %642 = vmatpush1.msra.mxu0 %v371
      %643 = vmatprep.subr.mxu0 0.0
      %644 = vmatpush1.msra.mxu0 %v372
      %645 = vmatprep.subr.mxu0 0.0
      %646 = vmatpush1.msra.mxu0 %v373
      %647 = vmatprep.subr.mxu0 0.0
      %648 = vmatpush1.msra.mxu0 %v374
      %649 = vmatprep.subr.mxu0 0.0
      %650 = vmatpush1.msra.mxu0 %v375
      %651 = vmatprep.subr.mxu0 0.0
      %652 = vmatpush1.msra.mxu0 %v376
      %653 = vmatprep.subr.mxu0 0.0
      %654 = vmatpush1.msra.mxu0 %v377
      %655 = vmatprep.subr.mxu0 0.0
      %656 = vmatpush1.msra.mxu0 %v378
      %657 = vmatprep.subr.mxu0 0.0
      %658 = vmatpush1.msra.mxu0 %v379
      %659 = vmatprep.subr.mxu0 0.0
      %660 = vmatpush1.msra.mxu0 %v380
      %661 = vmatprep.subr.mxu0 0.0
      %662 = vmatpush1.msra.mxu0 %v381
      %663 = vmatprep.subr.mxu0 0.0
      %664 = vmatpush1.msra.mxu0 %v382
      %665 = vmatprep.subr.mxu0 0.0
      %666 = vmatpush1.msra.mxu0 %v383
      %667 = vmatprep.subr.mxu0 0.0
      %668 = vmatpush1.msra.mxu0 %v384
      %669 = vmatprep.subr.mxu0 0.0
      %670 = vmatpush1.msra.mxu0 %v385
      %671 = vmatprep.subr.mxu0 0.0
      %672 = vmatpush1.msra.mxu0 %v386
      %673 = vmatprep.subr.mxu0 0.0
      %674 = vmatpush1.msra.mxu0 %v387
      %675 = vmatprep.mubr.f32.mxu0 %v461
      %676 = vmatmul.mubr.f32.gmra.mrb[0].mxu0 %v453
      %v677 = vpop.f32.mrb[0].mxu0
      %v678 = vadd.f32 %v608, %v677
      %v679 = vpop.f32.mrb[0].mxu0
      %680 = vdwg.mxu0
      %681 = vmatprep.subr.mxu0 0.0
      %682 = vmatpush1.msra.mxu0 %v388
      %683 = vmatprep.subr.mxu0 0.0
      %684 = vmatpush1.msra.mxu0 %v389
      %685 = vmatprep.subr.mxu0 0.0
      %686 = vmatpush1.msra.mxu0 %v390
      %687 = vmatprep.subr.mxu0 0.0
      %688 = vmatpush1.msra.mxu0 %v391
      %689 = vmatprep.subr.mxu0 0.0
      %690 = vmatpush1.msra.mxu0 %v392
      %691 = vmatprep.subr.mxu0 0.0
      %692 = vmatpush1.msra.mxu0 %v393
      %693 = vmatprep.subr.mxu0 0.0
      %694 = vmatpush1.msra.mxu0 %v394
      %695 = vmatprep.subr.mxu0 0.0
      %696 = vmatpush1.msra.mxu0 %v395
      %697 = vmatprep.subr.mxu0 0.0
      %698 = vmatpush1.msra.mxu0 %v396
      %699 = vmatprep.subr.mxu0 0.0
      %700 = vmatpush1.msra.mxu0 %v397
      %701 = vmatprep.subr.mxu0 0.0
      %702 = vmatpush1.msra.mxu0 %v398
      %703 = vmatprep.subr.mxu0 0.0
      %704 = vmatpush1.msra.mxu0 %v399
      %705 = vmatprep.subr.mxu0 0.0
      %706 = vmatpush1.msra.mxu0 %v400
      %707 = vmatprep.subr.mxu0 0.0
      %708 = vmatpush1.msra.mxu0 %v401
      %709 = vmatprep.subr.mxu0 0.0
      %710 = vmatpush1.msra.mxu0 %v402
      %711 = vmatprep.subr.mxu0 0.0
      %712 = vmatpush1.msra.mxu0 %v403
      %713 = vmatprep.subr.mxu0 0.0
      %714 = vmatpush1.msra.mxu0 %v404
      %715 = vmatprep.subr.mxu0 0.0
      %716 = vmatpush1.msra.mxu0 %v405
      %717 = vmatprep.subr.mxu0 0.0
      %718 = vmatpush1.msra.mxu0 %v406
      %719 = vmatprep.subr.mxu0 0.0
      %720 = vmatpush1.msra.mxu0 %v407
      %721 = vmatprep.subr.mxu0 0.0
      %722 = vmatpush1.msra.mxu0 %v408
      %723 = vmatprep.subr.mxu0 0.0
      %724 = vmatpush1.msra.mxu0 %v409
      %725 = vmatprep.subr.mxu0 0.0
      %726 = vmatpush1.msra.mxu0 %v410
      %727 = vmatprep.subr.mxu0 0.0
      %728 = vmatpush1.msra.mxu0 %v411
      %729 = vmatprep.subr.mxu0 0.0
      %730 = vmatpush1.msra.mxu0 %v412
      %731 = vmatprep.subr.mxu0 0.0
      %732 = vmatpush1.msra.mxu0 %v413
      %733 = vmatprep.subr.mxu0 0.0
      %734 = vmatpush1.msra.mxu0 %v414
      %735 = vmatprep.subr.mxu0 0.0
      %736 = vmatpush1.msra.mxu0 %v415
      %737 = vmatprep.subr.mxu0 0.0
      %738 = vmatpush1.msra.mxu0 %v416
      %739 = vmatprep.subr.mxu0 0.0
      %740 = vmatpush1.msra.mxu0 %v417
      %741 = vmatprep.subr.mxu0 0.0
      %742 = vmatpush1.msra.mxu0 %v418
      %743 = vmatprep.subr.mxu0 0.0
      %744 = vmatpush1.msra.mxu0 %v419
      %745 = vmatprep.mubr.f32.mxu0 %v462
      %746 = vmatmul.mubr.f32.gmra.mrb[0].mxu0 %v460
      %v747 = vpop.f32.mrb[0].mxu0
      %v748 = vadd.f32 %v678, %v747
      %v749 = vpop.f32.mrb[0].mxu0
      %750 = vdwg.mxu0
      %v751 = vmax.f32 %v748, 0.0
      %v752 = vld [vmem:[#allocation3] sm:$0x3]
      %v753 = vsub.f32 %v751, %v752
      %v754 = vld [vmem:[%s4] sm:$0xff]
      %v755 = vld [vmem:[%s4 + $0x8] sm:$0xff]
      %v756 = vld [vmem:[%s4 + $0x10] sm:$0xff]
      %v757 = vld [vmem:[%s4 + $0x18] sm:$0xff]
      %v758 = vld [vmem:[%s4 + $0x20] sm:$0xff]
      %v759 = vld [vmem:[%s4 + $0x28] sm:$0xff]
      %v760 = vld [vmem:[%s4 + $0x30] sm:$0xff]
      %v761 = vld [vmem:[%s4 + $0x38] sm:$0xff]
      %v762 = vld [vmem:[%s4 + $0x40] sm:$0xff]
      %v763 = vld [vmem:[%s4 + $0x48] sm:$0xff]
      %v764 = vld [vmem:[%s4 + $0x50] sm:$0xff]
      %v765 = vld [vmem:[%s4 + $0x58] sm:$0xff]
      %v766 = vld [vmem:[%s4 + $0x60] sm:$0xff]
      %v767 = vld [vmem:[%s4 + $0x68] sm:$0xff]
      %v768 = vld [vmem:[%s4 + $0x70] sm:$0xff]
      %v769 = vld [vmem:[%s4 + $0x78] sm:$0xff]
      %770 = vmatprep.subr.mxu0 0.0
      %771 = vmatpush1.msra.mxu0 %v754
      %772 = vmatprep.subr.mxu0 0.0
      %773 = vmatpush1.msra.mxu0 %v755
      %774 = vmatprep.subr.mxu0 0.0
      %775 = vmatpush1.msra.mxu0 %v756
      %776 = vmatprep.subr.mxu0 0.0
      %777 = vmatpush1.msra.mxu0 %v757
      %778 = vmatprep.subr.mxu0 0.0
      %779 = vmatpush1.msra.mxu0 %v758
      %780 = vmatprep.subr.mxu0 0.0
      %781 = vmatpush1.msra.mxu0 %v759
      %782 = vmatprep.subr.mxu0 0.0
      %783 = vmatpush1.msra.mxu0 %v760
      %784 = vmatprep.subr.mxu0 0.0
      %785 = vmatpush1.msra.mxu0 %v761
      %786 = vmatprep.subr.mxu0 0.0
      %787 = vmatpush1.msra.mxu0 %v762
      %788 = vmatprep.subr.mxu0 0.0
      %789 = vmatpush1.msra.mxu0 %v763
      %790 = vmatprep.subr.mxu0 0.0
      %791 = vmatpush1.msra.mxu0 %v764
      %792 = vmatprep.subr.mxu0 0.0
      %793 = vmatpush1.msra.mxu0 %v765
      %794 = vmatprep.subr.mxu0 0.0
      %795 = vmatpush1.msra.mxu0 %v766
      %796 = vmatprep.subr.mxu0 0.0
      %797 = vmatpush1.msra.mxu0 %v767
      %798 = vmatprep.subr.mxu0 0.0
      %799 = vmatpush1.msra.mxu0 %v768
      %800 = vmatprep.subr.mxu0 0.0
      %801 = vmatpush1.msra.mxu0 %v769
      %802 = vmatprep.subr.mxu0 0.0
      %803 = vmatpush1.msra.mxu0 0.0
      %804 = vmatprep.subr.mxu0 0.0
      %805 = vmatpush1.msra.mxu0 0.0
      %806 = vmatprep.subr.mxu0 0.0
      %807 = vmatpush1.msra.mxu0 0.0
      %808 = vmatprep.subr.mxu0 0.0
      %809 = vmatpush1.msra.mxu0 0.0
      %810 = vmatprep.subr.mxu0 0.0
      %811 = vmatpush1.msra.mxu0 0.0
      %812 = vmatprep.subr.mxu0 0.0
      %813 = vmatpush1.msra.mxu0 0.0
      %814 = vmatprep.subr.mxu0 0.0
      %815 = vmatpush1.msra.mxu0 0.0
      %816 = vmatprep.subr.mxu0 0.0
      %817 = vmatpush1.msra.mxu0 0.0
      %818 = vmatprep.subr.mxu0 0.0
      %819 = vmatpush1.msra.mxu0 0.0
      %820 = vmatprep.subr.mxu0 0.0
      %821 = vmatpush1.msra.mxu0 0.0
      %822 = vmatprep.subr.mxu0 0.0
      %823 = vmatpush1.msra.mxu0 0.0
      %824 = vmatprep.subr.mxu0 0.0
      %825 = vmatpush1.msra.mxu0 0.0
      %826 = vmatprep.subr.mxu0 0.0
      %827 = vmatpush1.msra.mxu0 0.0
      %828 = vmatprep.subr.mxu0 0.0
      %829 = vmatpush1.msra.mxu0 0.0
      %830 = vmatprep.subr.mxu0 0.0
      %831 = vmatpush1.msra.mxu0 0.0
      %832 = vmatprep.subr.mxu0 0.0
      %833 = vmatpush1.msra.mxu0 0.0
      %834 = vmatprep.mubr.f32.mxu0 0.0
      %835 = vmatmul.mubr.f32.gmra.mrb[0].mxu0 %v753
      %v836 = vpop.f32.mrb[0].mxu0
      %v837 = vadd.f32 1e-06, %v836
      %v838 = vpop.f32.mrb[0].mxu0
      %839 = vdwg.mxu0
      %v840 = vmul.f32 %v837, %v837
      %vm841 = vcmask 779264
      %v842 = vsel %vm841, %v840, 0.0
      %843 = vadd.xlane.f32.xlu0 %v842
      %v844 = vpop.xlane.xlu0 %843
      %v845 = vrsqrt.pop %v844
      %v846 = vmul.f32 %v844, %v845
      %vm847 = vcmp.eq.f32.partialorder %v844, inf
      %v848 = vsel %vm847, %v844, %v846
      %vm849 = vcmp.eq.f32.partialorder %v844, 0.0
      %v850 = vand.u32 %v844, 2147483648
      %v851 = vsel %vm849, %v850, %v848
      %852 = vst [vmem:[#allocation7] sm:$0x3] %v851
    $region33: #{tpu_custom_call.1} parent=1 // pred_fallthru
      _
    // Predicated region
    $region34: #{tpu_custom_call.1} parent=1 // pred_check
      _
    $region35: #{tpu_custom_call.1} parent=1 // pred_check_branch
      %854 = sbr.rel (0) target = $region37
    $region36: #{tpu_custom_call.1} parent=1 // pred_region
      %s856 = ssub.s32 32, 32
      %857 = vsyncadd [#allocation6], %s856
      %s859 = sshll.u32 [#allocation7], 4
      %s860 = int_to_ptr.vmem [resolvable:$true] %s859
      %862 = dma.vmem_to_hbm [thread:$0]  %s860, 32, %s5, [#allocation6]
    $region37: #{tpu_custom_call.1} parent=1 // pred_fallthru
      _
    // Predicated region
    $region38: #{tpu_custom_call.1} parent=1 // pred_check
      _
    $region39: #{tpu_custom_call.1} parent=1 // pred_check_branch
      %864 = sbr.rel (0) target = $region41
    $region40: #{tpu_custom_call.1} parent=1 // pred_region
      %865 = dma.done [#allocation6], 32
    $region41: #{tpu_custom_call.1} parent=1 // pred_fallthru
      _
    %866 = vsyncpa [#allocation5], 1
    %867 = vsyncpa [#allocation6], 1

// kernel: tpu_custom_call.1
$region0: #{tpu_custom_call.1}
  #allocation0 [shape = 'u32[]', space=smem, size = 0x4, offset = 0x4, fixed_abs, tag = 'smem constant byte address 0x4 - core index']
  #allocation1 [shape = 'u32[144,128]{1,0:T(1,128)}', space=vmem, size = 0x12000, scoped, tag = 'internal scratch']
  #allocation2 [shape = 'f32[2,1024]{1,0:T(2,128)}', space=vmem, size = 0x2000, scoped, tag = 'scratch operand']
  #allocation3 [shape = 'f32[2,128]{1,0:T(2,128)}', space=vmem, size = 0x400, scoped, tag = 'scratch operand']
  %s0 = inlined_call_operand.vmem [shape: f32[2,8,1024], index: 0, kind: input, shape index: {}]
  %s1 = inlined_call_operand.vmem [shape: f32[2,8,128], index: 1, kind: input, shape index: {}]
  %s2 = inlined_call_operand.hbm [shape: f32[1024,128], index: 2, kind: input, shape index: {}]
  %s3 = inlined_call_operand.vmem [shape: f32[1,128], index: 3, kind: input, shape index: {}]
  %s4 = inlined_call_operand.vmem [shape: f32[128,96], index: 4, kind: input, shape index: {}]
  %s5 = inlined_call_operand.hbm [shape: f32[2,128], index: 5, kind: output, shape index: {}]
  %s6 = sld [smem:[#allocation0]]
  $region42: #{tpu_custom_call.1} parent=0
    _
  %s8 = ssub.s32 1, %s6
  %s9 = scalar_select 0, %s8, %s6
  $region1: #{tpu_custom_call.1} parent=0
    #allocation4 [shape = 'u8[524288]{0}', space=vmem, size = 0x80000, scoped, tag = 'input window, operand 2, single buffered']
    #allocation5 [shape = 's32[1]{0}', space=sflag, size = 0x4, scoped, tag = 'scoped memory for tpu_custom_call.1']
    #allocation6 [shape = 's32[1]{0}', space=sflag, size = 0x4, scoped, tag = 'scoped memory for tpu_custom_call.1']
    #allocation7 [shape = 'u8[1024]{0}', space=vmem, size = 0x400, scoped, tag = 'output window, operand 0, single buffered']
    %10 = vsyncpa [#allocation5], 0
    %11 = vsyncpa [#allocation6], 0
    // Predicated region
    $region2: #{tpu_custom_call.1} parent=1 // pred_check
      _
    $region3: #{tpu_custom_call.1} parent=1 // pred_check_branch
      %13 = sbr.rel (0) target = $region5
    $region4: #{tpu_custom_call.1} parent=1 // pred_region
      _
    $region5: #{tpu_custom_call.1} parent=1 // pred_fallthru
      _
    // Predicated region
    $region6: #{tpu_custom_call.1} parent=1 // pred_check
      _
    $region7: #{tpu_custom_call.1} parent=1 // pred_check_branch
      %15 = sbr.rel (0) target = $region9
    $region8: #{tpu_custom_call.1} parent=1 // pred_region
      _
    $region9: #{tpu_custom_call.1} parent=1 // pred_fallthru
      _
    // Predicated region
    $region10: #{tpu_custom_call.1} parent=1 // pred_check
      _
    $region11: #{tpu_custom_call.1} parent=1 // pred_check_branch
      %17 = sbr.rel (0) target = $region13
    $region12: #{tpu_custom_call.1} parent=1 // pred_region
      %s19 = ssub.s32 16384, 16384
      %20 = vsyncadd [#allocation5], %s19
      %s21 = sshll.u32 [#allocation4], 4
      %s22 = int_to_ptr.vmem [resolvable:$true] %s21
      %27 = dma.hbm_to_vmem [thread:$0]  %s2, 16384, %s22, [#allocation5], 128, 128, 8
    $region13: #{tpu_custom_call.1} parent=1 // pred_fallthru
      _
    // Predicated region
    $region14: #{tpu_custom_call.1} parent=1 // pred_check
      _
    $region15: #{tpu_custom_call.1} parent=1 // pred_check_branch
      %29 = sbr.rel (0) target = $region17
    $region16: #{tpu_custom_call.1} parent=1 // pred_region
      _
    $region17: #{tpu_custom_call.1} parent=1 // pred_fallthru
      _
    // Predicated region
    $region18: #{tpu_custom_call.1} parent=1 // pred_check
      _
    $region19: #{tpu_custom_call.1} parent=1 // pred_check_branch
      %31 = sbr.rel (0) target = $region21
    $region20: #{tpu_custom_call.1} parent=1 // pred_region
      _
    $region21: #{tpu_custom_call.1} parent=1 // pred_fallthru
      _
    // Predicated region
    $region22: #{tpu_custom_call.1} parent=1 // pred_check
      _
    $region23: #{tpu_custom_call.1} parent=1 // pred_check_branch
      %33 = sbr.rel (0) target = $region25
    $region24: #{tpu_custom_call.1} parent=1 // pred_region
      %34 = dma.done [#allocation5], 16384
    $region25: #{tpu_custom_call.1} parent=1 // pred_fallthru
      _
    %p35 = scmp.eq.s32.totalorder 0, 0
    // Predicated region
    $region26: #{tpu_custom_call.1} parent=1 // pred_check
      %p36 = pneg %p35
    $region27: #{tpu_custom_call.1} parent=1 // pred_check_branch
      %38 = sbr.rel (%p36) target = $region29
    $region28: #{tpu_custom_call.1} parent=1 // pred_region
      %39 = vst [vmem:[#allocation2] sm:$0xff] -inf
      %40 = vst [vmem:[#allocation2 + $0x8] sm:$0xff] -inf
      %41 = vst [vmem:[#allocation3] sm:$0x3] -inf
    $region29: #{tpu_custom_call.1} parent=1 // pred_fallthru
      _
    %v42 = vld [vmem:[#allocation2] sm:$0xff]
    %v43 = vld [vmem:[#allocation2 + $0x8] sm:$0xff]
    %v44 = vld [vmem:[%s0] sm:$0xff]
    %v45 = vld [vmem:[%s0 + $0x8] sm:$0xff]
    %v46 = vld [vmem:[%s0 + $0x10] sm:$0xff]
    %v47 = vld [vmem:[%s0 + $0x18] sm:$0xff]
    %v48 = vld [vmem:[%s0 + $0x20] sm:$0xff]
    %v49 = vld [vmem:[%s0 + $0x28] sm:$0xff]
    %v50 = vld [vmem:[%s0 + $0x30] sm:$0xff]
    %v51 = vld [vmem:[%s0 + $0x38] sm:$0xff]
    %v52 = vld [vmem:[%s0 + $0x40] sm:$0xff]
    %v53 = vld [vmem:[%s0 + $0x48] sm:$0xff]
    %v54 = vld [vmem:[%s0 + $0x50] sm:$0xff]
    %v55 = vld [vmem:[%s0 + $0x58] sm:$0xff]
    %v56 = vld [vmem:[%s0 + $0x60] sm:$0xff]
    %v57 = vld [vmem:[%s0 + $0x68] sm:$0xff]
    %v58 = vld [vmem:[%s0 + $0x70] sm:$0xff]
    %v59 = vld [vmem:[%s0 + $0x78] sm:$0xff]
    %v60 = vrot.slane %v44, 4
    %v61 = vmax.f32 %v44, %v60
    %v62 = vrot.slane %v61, 2
    %v63 = vmax.f32 %v61, %v62
    %v64 = vrot.slane %v63, 1
    %v65 = vmax.f32 %v63, %v64
    %v66 = vrot.slane %v45, 4
    %v67 = vmax.f32 %v45, %v66
    %v68 = vrot.slane %v67, 2
    %v69 = vmax.f32 %v67, %v68
    %v70 = vrot.slane %v69, 1
    %v71 = vmax.f32 %v69, %v70
    %v72 = vrot.slane %v46, 4
    %v73 = vmax.f32 %v46, %v72
    %v74 = vrot.slane %v73, 2
    %v75 = vmax.f32 %v73, %v74
    %v76 = vrot.slane %v75, 1
    %v77 = vmax.f32 %v75, %v76
    %v78 = vrot.slane %v47, 4
    %v79 = vmax.f32 %v47, %v78
    %v80 = vrot.slane %v79, 2
    %v81 = vmax.f32 %v79, %v80
    %v82 = vrot.slane %v81, 1
    %v83 = vmax.f32 %v81, %v82
    %v84 = vrot.slane %v48, 4
    %v85 = vmax.f32 %v48, %v84
    %v86 = vrot.slane %v85, 2
    %v87 = vmax.f32 %v85, %v86
    %v88 = vrot.slane %v87, 1
    %v89 = vmax.f32 %v87, %v88
    %v90 = vrot.slane %v49, 4
    %v91 = vmax.f32 %v49, %v90
    %v92 = vrot.slane %v91, 2
    %v93 = vmax.f32 %v91, %v92
    %v94 = vrot.slane %v93, 1
    %v95 = vmax.f32 %v93, %v94
    %v96 = vrot.slane %v50, 4
    %v97 = vmax.f32 %v50, %v96
    %v98 = vrot.slane %v97, 2
    %v99 = vmax.f32 %v97, %v98
    %v100 = vrot.slane %v99, 1
    %v101 = vmax.f32 %v99, %v100
    %v102 = vrot.slane %v51, 4
    %v103 = vmax.f32 %v51, %v102
    %v104 = vrot.slane %v103, 2
    %v105 = vmax.f32 %v103, %v104
    %v106 = vrot.slane %v105, 1
    %v107 = vmax.f32 %v105, %v106
    %v108 = vrot.slane %v52, 4
    %v109 = vmax.f32 %v52, %v108
    %v110 = vrot.slane %v109, 2
    %v111 = vmax.f32 %v109, %v110
    %v112 = vrot.slane %v111, 1
    %v113 = vmax.f32 %v111, %v112
    %v114 = vrot.slane %v53, 4
    %v115 = vmax.f32 %v53, %v114
    %v116 = vrot.slane %v115, 2
    %v117 = vmax.f32 %v115, %v116
    %v118 = vrot.slane %v117, 1
    %v119 = vmax.f32 %v117, %v118
    %v120 = vrot.slane %v54, 4
    %v121 = vmax.f32 %v54, %v120
    %v122 = vrot.slane %v121, 2
    %v123 = vmax.f32 %v121, %v122
    %v124 = vrot.slane %v123, 1
    %v125 = vmax.f32 %v123, %v124
    %v126 = vrot.slane %v55, 4
    %v127 = vmax.f32 %v55, %v126
    %v128 = vrot.slane %v127, 2
    %v129 = vmax.f32 %v127, %v128
    %v130 = vrot.slane %v129, 1
    %v131 = vmax.f32 %v129, %v130
    %v132 = vrot.slane %v56, 4
    %v133 = vmax.f32 %v56, %v132
    %v134 = vrot.slane %v133, 2
    %v135 = vmax.f32 %v133, %v134
    %v136 = vrot.slane %v135, 1
    %v137 = vmax.f32 %v135, %v136
    %v138 = vrot.slane %v57, 4
    %v139 = vmax.f32 %v57, %v138
    %v140 = vrot.slane %v139, 2
    %v141 = vmax.f32 %v139, %v140
    %v142 = vrot.slane %v141, 1
    %v143 = vmax.f32 %v141, %v142
    %v144 = vrot.slane %v58, 4
    %v145 = vmax.f32 %v58, %v144
    %v146 = vrot.slane %v145, 2
    %v147 = vmax.f32 %v145, %v146
    %v148 = vrot.slane %v147, 1
    %v149 = vmax.f32 %v147, %v148
    %v150 = vrot.slane %v59, 4
    %v151 = vmax.f32 %v59, %v150
    %v152 = vrot.slane %v151, 2
    %v153 = vmax.f32 %v151, %v152
    %v154 = vrot.slane %v153, 1
    %v155 = vmax.f32 %v153, %v154
    %v172 = vcombine.low %v65, %v71
    %v173 = vcombine.low %v77, %v83
    %v175 = vunpack.c.l.s4 1983009808
    %v176 = vunpack.c.0.s8 %v175
    %v177 = vlaneseq
    %v178 = vshrl.u32 %v177, 7
    %v179 = vsub.s32 %v176, %v178
    %v180 = vrot.slane %v172, %v179
    %v182 = vunpack.c.l.s4 1983009808
    %v183 = vunpack.c.0.s8 %v182
    %v184 = vlaneseq
    %v185 = vshrl.u32 %v184, 7
    %v186 = vsub.s32 %v183, %v185
    %v187 = vrot.slane %v173, %v186
    %v188 = vcombine.low %v180, %v187
    %v189 = vcombine.low %v89, %v95
    %v190 = vcombine.low %v101, %v107
    %v192 = vunpack.c.l.s4 1983009808
    %v193 = vunpack.c.0.s8 %v192
    %v194 = vlaneseq
    %v195 = vshrl.u32 %v194, 7
    %v196 = vsub.s32 %v193, %v195
    %v197 = vrot.slane %v189, %v196
    %v199 = vunpack.c.l.s4 1983009808
    %v200 = vunpack.c.0.s8 %v199
    %v201 = vlaneseq
    %v202 = vshrl.u32 %v201, 7
    %v203 = vsub.s32 %v200, %v202
    %v204 = vrot.slane %v190, %v203
    %v205 = vcombine.low %v197, %v204
    %v206 = vcombine.low %v113, %v119
    %v207 = vcombine.low %v125, %v131
    %v209 = vunpack.c.l.s4 1983009808
    %v210 = vunpack.c.0.s8 %v209
    %v211 = vlaneseq
    %v212 = vshrl.u32 %v211, 7
    %v213 = vsub.s32 %v210, %v212
    %v214 = vrot.slane %v206, %v213
    %v216 = vunpack.c.l.s4 1983009808
    %v217 = vunpack.c.0.s8 %v216
    %v218 = vlaneseq
    %v219 = vshrl.u32 %v218, 7
    %v220 = vsub.s32 %v217, %v219
    %v221 = vrot.slane %v207, %v220
    %v222 = vcombine.low %v214, %v221
    %v223 = vcombine.low %v137, %v143
    %v224 = vcombine.low %v149, %v155
    %v226 = vunpack.c.l.s4 1983009808
    %v227 = vunpack.c.0.s8 %v226
    %v228 = vlaneseq
    %v229 = vshrl.u32 %v228, 7
    %v230 = vsub.s32 %v227, %v229
    %v231 = vrot.slane %v223, %v230
    %v233 = vunpack.c.l.s4 1983009808
    %v234 = vunpack.c.0.s8 %v233
    %v235 = vlaneseq
    %v236 = vshrl.u32 %v235, 7
    %v237 = vsub.s32 %v234, %v236
    %v238 = vrot.slane %v224, %v237
    %v239 = vcombine.low %v231, %v238
    %vm240 = vcmask 1044484
    %v241 = vsel %vm240, %v188, %v188
    %vm242 = vcmask 1046534
    %v243 = vsel %vm242, %v188, %v241
    %v244 = vrot.slane %v222, 7
    %vm245 = vcmask 1041409
    %v246 = vsel %vm245, %v244, %v243
    %vm247 = vcmask 1043459
    %v248 = vsel %vm247, %v244, %v246
    %vm249 = vcmask 1045509
    %v250 = vsel %vm249, %v244, %v248
    %vm251 = vcmask 1047559
    %v252 = vsel %vm251, %v244, %v250
    %v253 = vsel %vm240, %v205, %v205
    %v254 = vsel %vm242, %v205, %v253
    %v255 = vrot.slane %v239, 7
    %v256 = vsel %vm245, %v255, %v254
    %v257 = vsel %vm247, %v255, %v256
    %v258 = vsel %vm249, %v255, %v257
    %v259 = vsel %vm251, %v255, %v258
    %v262 = vmax.f32 %v42, %v252
    %v263 = vmax.f32 %v43, %v259
    %264 = vst [vmem:[#allocation2] sm:$0xff] %v262
    %265 = vst [vmem:[#allocation2 + $0x8] sm:$0xff] %v263
    %v266 = vld [vmem:[#allocation3] sm:$0x3]
    %v267 = vld [vmem:[%s1] sm:$0xff]
    %v268 = vld [vmem:[%s1 + $0x8] sm:$0xff]
    %v269 = vrot.slane %v267, 4
    %v270 = vmax.f32 %v267, %v269
    %v271 = vrot.slane %v270, 2
    %v272 = vmax.f32 %v270, %v271
    %v273 = vrot.slane %v272, 1
    %v274 = vmax.f32 %v272, %v273
    %v275 = vrot.slane %v268, 4
    %v276 = vmax.f32 %v268, %v275
    %v277 = vrot.slane %v276, 2
    %v278 = vmax.f32 %v276, %v277
    %v279 = vrot.slane %v278, 1
    %v280 = vmax.f32 %v278, %v279
    %v283 = vsel %vm245, %v280, %v274
    %v285 = vmax.f32 %v266, %v283
    %286 = vst [vmem:[#allocation3] sm:$0x3] %v285
    // Predicated region
    $region30: #{tpu_custom_call.1} parent=1 // pred_check
      %p287 = pneg %p35
    $region31: #{tpu_custom_call.1} parent=1 // pred_check_branch
      %289 = sbr.rel (%p287) target = $region33
    $region32: #{tpu_custom_call.1} parent=1 // pred_region
      %v290 = vld [vmem:[#allocation2] sm:$0xff]
      %v291 = vld [vmem:[#allocation2 + $0x8] sm:$0xff]
      %v292 = vld [vmem:[#allocation4] sm:$0xff]
      %v293 = vld [vmem:[#allocation4 + $0x8] sm:$0xff]
      %v294 = vld [vmem:[#allocation4 + $0x10] sm:$0xff]
      %v295 = vld [vmem:[#allocation4 + $0x18] sm:$0xff]
      %v296 = vld [vmem:[#allocation4 + $0x20] sm:$0xff]
      %v297 = vld [vmem:[#allocation4 + $0x28] sm:$0xff]
      %v298 = vld [vmem:[#allocation4 + $0x30] sm:$0xff]
      %v299 = vld [vmem:[#allocation4 + $0x38] sm:$0xff]
      %v300 = vld [vmem:[#allocation4 + $0x40] sm:$0xff]
      %v301 = vld [vmem:[#allocation4 + $0x48] sm:$0xff]
      %v302 = vld [vmem:[#allocation4 + $0x50] sm:$0xff]
      %v303 = vld [vmem:[#allocation4 + $0x58] sm:$0xff]
      %v304 = vld [vmem:[#allocation4 + $0x60] sm:$0xff]
      %v305 = vld [vmem:[#allocation4 + $0x68] sm:$0xff]
      %v306 = vld [vmem:[#allocation4 + $0x70] sm:$0xff]
      %v307 = vld [vmem:[#allocation4 + $0x78] sm:$0xff]
      %v308 = vld [vmem:[#allocation4 + $0x80] sm:$0xff]
      %v309 = vld [vmem:[#allocation4 + $0x88] sm:$0xff]
      %v310 = vld [vmem:[#allocation4 + $0x90] sm:$0xff]
      %v311 = vld [vmem:[#allocation4 + $0x98] sm:$0xff]
      %v312 = vld [vmem:[#allocation4 + $0xa0] sm:$0xff]
      %v313 = vld [vmem:[#allocation4 + $0xa8] sm:$0xff]
      %v314 = vld [vmem:[#allocation4 + $0xb0] sm:$0xff]
      %v315 = vld [vmem:[#allocation4 + $0xb8] sm:$0xff]
      %v316 = vld [vmem:[#allocation4 + $0xc0] sm:$0xff]
      %v317 = vld [vmem:[#allocation4 + $0xc8] sm:$0xff]
      %v318 = vld [vmem:[#allocation4 + $0xd0] sm:$0xff]
      %v319 = vld [vmem:[#allocation4 + $0xd8] sm:$0xff]
      %v320 = vld [vmem:[#allocation4 + $0xe0] sm:$0xff]
      %v321 = vld [vmem:[#allocation4 + $0xe8] sm:$0xff]
      %v322 = vld [vmem:[#allocation4 + $0xf0] sm:$0xff]
      %v323 = vld [vmem:[#allocation4 + $0xf8] sm:$0xff]
      %v324 = vld [vmem:[#allocation4 + $0x100] sm:$0xff]
      %v325 = vld [vmem:[#allocation4 + $0x108] sm:$0xff]
      %v326 = vld [vmem:[#allocation4 + $0x110] sm:$0xff]
      %v327 = vld [vmem:[#allocation4 + $0x118] sm:$0xff]
      %v328 = vld [vmem:[#allocation4 + $0x120] sm:$0xff]
      %v329 = vld [vmem:[#allocation4 + $0x128] sm:$0xff]
      %v330 = vld [vmem:[#allocation4 + $0x130] sm:$0xff]
      %v331 = vld [vmem:[#allocation4 + $0x138] sm:$0xff]
      %v332 = vld [vmem:[#allocation4 + $0x140] sm:$0xff]
      %v333 = vld [vmem:[#allocation4 + $0x148] sm:$0xff]
      %v334 = vld [vmem:[#allocation4 + $0x150] sm:$0xff]
      %v335 = vld [vmem:[#allocation4 + $0x158] sm:$0xff]
      %v336 = vld [vmem:[#allocation4 + $0x160] sm:$0xff]
      %v337 = vld [vmem:[#allocation4 + $0x168] sm:$0xff]
      %v338 = vld [vmem:[#allocation4 + $0x170] sm:$0xff]
      %v339 = vld [vmem:[#allocation4 + $0x178] sm:$0xff]
      %v340 = vld [vmem:[#allocation4 + $0x180] sm:$0xff]
      %v341 = vld [vmem:[#allocation4 + $0x188] sm:$0xff]
      %v342 = vld [vmem:[#allocation4 + $0x190] sm:$0xff]
      %v343 = vld [vmem:[#allocation4 + $0x198] sm:$0xff]
      %v344 = vld [vmem:[#allocation4 + $0x1a0] sm:$0xff]
      %v345 = vld [vmem:[#allocation4 + $0x1a8] sm:$0xff]
      %v346 = vld [vmem:[#allocation4 + $0x1b0] sm:$0xff]
      %v347 = vld [vmem:[#allocation4 + $0x1b8] sm:$0xff]
      %v348 = vld [vmem:[#allocation4 + $0x1c0] sm:$0xff]
      %v349 = vld [vmem:[#allocation4 + $0x1c8] sm:$0xff]
      %v350 = vld [vmem:[#allocation4 + $0x1d0] sm:$0xff]
      %v351 = vld [vmem:[#allocation4 + $0x1d8] sm:$0xff]
      %v352 = vld [vmem:[#allocation4 + $0x1e0] sm:$0xff]
      %v353 = vld [vmem:[#allocation4 + $0x1e8] sm:$0xff]
      %v354 = vld [vmem:[#allocation4 + $0x1f0] sm:$0xff]
      %v355 = vld [vmem:[#allocation4 + $0x1f8] sm:$0xff]
      %v356 = vld [vmem:[#allocation4 + $0x200] sm:$0xff]
      %v357 = vld [vmem:[#allocation4 + $0x208] sm:$0xff]
      %v358 = vld [vmem:[#allocation4 + $0x210] sm:$0xff]
      %v359 = vld [vmem:[#allocation4 + $0x218] sm:$0xff]
      %v360 = vld [vmem:[#allocation4 + $0x220] sm:$0xff]
      %v361 = vld [vmem:[#allocation4 + $0x228] sm:$0xff]
      %v362 = vld [vmem:[#allocation4 + $0x230] sm:$0xff]
      %v363 = vld [vmem:[#allocation4 + $0x238] sm:$0xff]
      %v364 = vld [vmem:[#allocation4 + $0x240] sm:$0xff]
      %v365 = vld [vmem:[#allocation4 + $0x248] sm:$0xff]
      %v366 = vld [vmem:[#allocation4 + $0x250] sm:$0xff]
      %v367 = vld [vmem:[#allocation4 + $0x258] sm:$0xff]
      %v368 = vld [vmem:[#allocation4 + $0x260] sm:$0xff]
      %v369 = vld [vmem:[#allocation4 + $0x268] sm:$0xff]
      %v370 = vld [vmem:[#allocation4 + $0x270] sm:$0xff]
      %v371 = vld [vmem:[#allocation4 + $0x278] sm:$0xff]
      %v372 = vld [vmem:[#allocation4 + $0x280] sm:$0xff]
      %v373 = vld [vmem:[#allocation4 + $0x288] sm:$0xff]
      %v374 = vld [vmem:[#allocation4 + $0x290] sm:$0xff]
      %v375 = vld [vmem:[#allocation4 + $0x298] sm:$0xff]
      %v376 = vld [vmem:[#allocation4 + $0x2a0] sm:$0xff]
      %v377 = vld [vmem:[#allocation4 + $0x2a8] sm:$0xff]
      %v378 = vld [vmem:[#allocation4 + $0x2b0] sm:$0xff]
      %v379 = vld [vmem:[#allocation4 + $0x2b8] sm:$0xff]
      %v380 = vld [vmem:[#allocation4 + $0x2c0] sm:$0xff]
      %v381 = vld [vmem:[#allocation4 + $0x2c8] sm:$0xff]
      %v382 = vld [vmem:[#allocation4 + $0x2d0] sm:$0xff]
      %v383 = vld [vmem:[#allocation4 + $0x2d8] sm:$0xff]
      %v384 = vld [vmem:[#allocation4 + $0x2e0] sm:$0xff]
      %v385 = vld [vmem:[#allocation4 + $0x2e8] sm:$0xff]
      %v386 = vld [vmem:[#allocation4 + $0x2f0] sm:$0xff]
      %v387 = vld [vmem:[#allocation4 + $0x2f8] sm:$0xff]
      %v388 = vld [vmem:[#allocation4 + $0x300] sm:$0xff]
      %v389 = vld [vmem:[#allocation4 + $0x308] sm:$0xff]
      %v390 = vld [vmem:[#allocation4 + $0x310] sm:$0xff]
      %v391 = vld [vmem:[#allocation4 + $0x318] sm:$0xff]
      %v392 = vld [vmem:[#allocation4 + $0x320] sm:$0xff]
      %v393 = vld [vmem:[#allocation4 + $0x328] sm:$0xff]
      %v394 = vld [vmem:[#allocation4 + $0x330] sm:$0xff]
      %v395 = vld [vmem:[#allocation4 + $0x338] sm:$0xff]
      %v396 = vld [vmem:[#allocation4 + $0x340] sm:$0xff]
      %v397 = vld [vmem:[#allocation4 + $0x348] sm:$0xff]
      %v398 = vld [vmem:[#allocation4 + $0x350] sm:$0xff]
      %v399 = vld [vmem:[#allocation4 + $0x358] sm:$0xff]
      %v400 = vld [vmem:[#allocation4 + $0x360] sm:$0xff]
      %v401 = vld [vmem:[#allocation4 + $0x368] sm:$0xff]
      %v402 = vld [vmem:[#allocation4 + $0x370] sm:$0xff]
      %v403 = vld [vmem:[#allocation4 + $0x378] sm:$0xff]
      %v404 = vld [vmem:[#allocation4 + $0x380] sm:$0xff]
      %v405 = vld [vmem:[#allocation4 + $0x388] sm:$0xff]
      %v406 = vld [vmem:[#allocation4 + $0x390] sm:$0xff]
      %v407 = vld [vmem:[#allocation4 + $0x398] sm:$0xff]
      %v408 = vld [vmem:[#allocation4 + $0x3a0] sm:$0xff]
      %v409 = vld [vmem:[#allocation4 + $0x3a8] sm:$0xff]
      %v410 = vld [vmem:[#allocation4 + $0x3b0] sm:$0xff]
      %v411 = vld [vmem:[#allocation4 + $0x3b8] sm:$0xff]
      %v412 = vld [vmem:[#allocation4 + $0x3c0] sm:$0xff]
      %v413 = vld [vmem:[#allocation4 + $0x3c8] sm:$0xff]
      %v414 = vld [vmem:[#allocation4 + $0x3d0] sm:$0xff]
      %v415 = vld [vmem:[#allocation4 + $0x3d8] sm:$0xff]
      %v416 = vld [vmem:[#allocation4 + $0x3e0] sm:$0xff]
      %v417 = vld [vmem:[#allocation4 + $0x3e8] sm:$0xff]
      %v418 = vld [vmem:[#allocation4 + $0x3f0] sm:$0xff]
      %v419 = vld [vmem:[#allocation4 + $0x3f8] sm:$0xff]
      %v420 = vld [vmem:[%s3] sm:$0x1]
      %v422 = vlaneseq
      %v423 = vshrl.u32 %v422, 7
      %v424 = vsub.s32 0, %v423
      %v425 = vrot.slane %v420, %v424
      %v429 = vcombine.high %v290, %v290
      %v431 = vunpack.c.l.s4 1983009808
      %v432 = vunpack.c.0.s8 %v431
      %v433 = vlaneseq
      %v434 = vshrl.u32 %v433, 7
      %v435 = vsub.s32 %v432, %v434
      %v436 = vrot.slane %v290, %v435
      %v438 = vunpack.c.l.s4 1983009808
      %v439 = vunpack.c.0.s8 %v438
      %v440 = vlaneseq
      %v441 = vshrl.u32 %v440, 7
      %v442 = vsub.s32 %v439, %v441
      %v443 = vrot.slane %v429, %v442
      %v444 = vcombine.high %v436, %v436
      %v445 = vcombine.high %v443, %v443
      %v446 = vcombine.high %v291, %v291
      %v448 = vunpack.c.l.s4 1983009808
      %v449 = vunpack.c.0.s8 %v448
      %v450 = vlaneseq
      %v451 = vshrl.u32 %v450, 7
      %v452 = vsub.s32 %v449, %v451
      %v453 = vrot.slane %v291, %v452
      %v455 = vunpack.c.l.s4 1983009808
      %v456 = vunpack.c.0.s8 %v455
      %v457 = vlaneseq
      %v458 = vshrl.u32 %v457, 7
      %v459 = vsub.s32 %v456, %v458
      %v460 = vrot.slane %v446, %v459
      %v461 = vcombine.high %v453, %v453
      %v462 = vcombine.high %v460, %v460
      %471 = vmatprep.subr.mxu0 0.0
      %472 = vmatpush1.msra.mxu0 %v292
      %473 = vmatprep.subr.mxu0 0.0
      %474 = vmatpush1.msra.mxu0 %v293
      %475 = vmatprep.subr.mxu0 0.0
      %476 = vmatpush1.msra.mxu0 %v294
      %477 = vmatprep.subr.mxu0 0.0
      %478 = vmatpush1.msra.mxu0 %v295
      %479 = vmatprep.subr.mxu0 0.0
      %480 = vmatpush1.msra.mxu0 %v296
      %481 = vmatprep.subr.mxu0 0.0
      %482 = vmatpush1.msra.mxu0 %v297
      %483 = vmatprep.subr.mxu0 0.0
      %484 = vmatpush1.msra.mxu0 %v298
      %485 = vmatprep.subr.mxu0 0.0
      %486 = vmatpush1.msra.mxu0 %v299
      %487 = vmatprep.subr.mxu0 0.0
      %488 = vmatpush1.msra.mxu0 %v300
      %489 = vmatprep.subr.mxu0 0.0
      %490 = vmatpush1.msra.mxu0 %v301
      %491 = vmatprep.subr.mxu0 0.0
      %492 = vmatpush1.msra.mxu0 %v302
      %493 = vmatprep.subr.mxu0 0.0
      %494 = vmatpush1.msra.mxu0 %v303
      %495 = vmatprep.subr.mxu0 0.0
      %496 = vmatpush1.msra.mxu0 %v304
      %497 = vmatprep.subr.mxu0 0.0
      %498 = vmatpush1.msra.mxu0 %v305
      %499 = vmatprep.subr.mxu0 0.0
      %500 = vmatpush1.msra.mxu0 %v306
      %501 = vmatprep.subr.mxu0 0.0
      %502 = vmatpush1.msra.mxu0 %v307
      %503 = vmatprep.subr.mxu0 0.0
      %504 = vmatpush1.msra.mxu0 %v308
      %505 = vmatprep.subr.mxu0 0.0
      %506 = vmatpush1.msra.mxu0 %v309
      %507 = vmatprep.subr.mxu0 0.0
      %508 = vmatpush1.msra.mxu0 %v310
      %509 = vmatprep.subr.mxu0 0.0
      %510 = vmatpush1.msra.mxu0 %v311
      %511 = vmatprep.subr.mxu0 0.0
      %512 = vmatpush1.msra.mxu0 %v312
      %513 = vmatprep.subr.mxu0 0.0
      %514 = vmatpush1.msra.mxu0 %v313
      %515 = vmatprep.subr.mxu0 0.0
      %516 = vmatpush1.msra.mxu0 %v314
      %517 = vmatprep.subr.mxu0 0.0
      %518 = vmatpush1.msra.mxu0 %v315
      %519 = vmatprep.subr.mxu0 0.0
      %520 = vmatpush1.msra.mxu0 %v316
      %521 = vmatprep.subr.mxu0 0.0
      %522 = vmatpush1.msra.mxu0 %v317
      %523 = vmatprep.subr.mxu0 0.0
      %524 = vmatpush1.msra.mxu0 %v318
      %525 = vmatprep.subr.mxu0 0.0
      %526 = vmatpush1.msra.mxu0 %v319
      %527 = vmatprep.subr.mxu0 0.0
      %528 = vmatpush1.msra.mxu0 %v320
      %529 = vmatprep.subr.mxu0 0.0
      %530 = vmatpush1.msra.mxu0 %v321
      %531 = vmatprep.subr.mxu0 0.0
      %532 = vmatpush1.msra.mxu0 %v322
      %533 = vmatprep.subr.mxu0 0.0
      %534 = vmatpush1.msra.mxu0 %v323
      %535 = vmatprep.mubr.f32.mxu0 %v444
      %536 = vmatmul.mubr.f32.gmra.mrb[0].mxu0 %v436
      %v537 = vpop.f32.mrb[0].mxu0
      %v538 = vadd.f32 %v425, %v537
      %v539 = vpop.f32.mrb[0].mxu0
      %540 = vdwg.mxu0
      %541 = vmatprep.subr.mxu0 0.0
      %542 = vmatpush1.msra.mxu0 %v324
      %543 = vmatprep.subr.mxu0 0.0
      %544 = vmatpush1.msra.mxu0 %v325
      %545 = vmatprep.subr.mxu0 0.0
      %546 = vmatpush1.msra.mxu0 %v326
      %547 = vmatprep.subr.mxu0 0.0
      %548 = vmatpush1.msra.mxu0 %v327
      %549 = vmatprep.subr.mxu0 0.0
      %550 = vmatpush1.msra.mxu0 %v328
      %551 = vmatprep.subr.mxu0 0.0
      %552 = vmatpush1.msra.mxu0 %v329
      %553 = vmatprep.subr.mxu0 0.0
      %554 = vmatpush1.msra.mxu0 %v330
      %555 = vmatprep.subr.mxu0 0.0
      %556 = vmatpush1.msra.mxu0 %v331
      %557 = vmatprep.subr.mxu0 0.0
      %558 = vmatpush1.msra.mxu0 %v332
      %559 = vmatprep.subr.mxu0 0.0
      %560 = vmatpush1.msra.mxu0 %v333
      %561 = vmatprep.subr.mxu0 0.0
      %562 = vmatpush1.msra.mxu0 %v334
      %563 = vmatprep.subr.mxu0 0.0
      %564 = vmatpush1.msra.mxu0 %v335
      %565 = vmatprep.subr.mxu0 0.0
      %566 = vmatpush1.msra.mxu0 %v336
      %567 = vmatprep.subr.mxu0 0.0
      %568 = vmatpush1.msra.mxu0 %v337
      %569 = vmatprep.subr.mxu0 0.0
      %570 = vmatpush1.msra.mxu0 %v338
      %571 = vmatprep.subr.mxu0 0.0
      %572 = vmatpush1.msra.mxu0 %v339
      %573 = vmatprep.subr.mxu0 0.0
      %574 = vmatpush1.msra.mxu0 %v340
      %575 = vmatprep.subr.mxu0 0.0
      %576 = vmatpush1.msra.mxu0 %v341
      %577 = vmatprep.subr.mxu0 0.0
      %578 = vmatpush1.msra.mxu0 %v342
      %579 = vmatprep.subr.mxu0 0.0
      %580 = vmatpush1.msra.mxu0 %v343
      %581 = vmatprep.subr.mxu0 0.0
      %582 = vmatpush1.msra.mxu0 %v344
      %583 = vmatprep.subr.mxu0 0.0
      %584 = vmatpush1.msra.mxu0 %v345
      %585 = vmatprep.subr.mxu0 0.0
      %586 = vmatpush1.msra.mxu0 %v346
      %587 = vmatprep.subr.mxu0 0.0
      %588 = vmatpush1.msra.mxu0 %v347
      %589 = vmatprep.subr.mxu0 0.0
      %590 = vmatpush1.msra.mxu0 %v348
      %591 = vmatprep.subr.mxu0 0.0
      %592 = vmatpush1.msra.mxu0 %v349
      %593 = vmatprep.subr.mxu0 0.0
      %594 = vmatpush1.msra.mxu0 %v350
      %595 = vmatprep.subr.mxu0 0.0
      %596 = vmatpush1.msra.mxu0 %v351
      %597 = vmatprep.subr.mxu0 0.0
      %598 = vmatpush1.msra.mxu0 %v352
      %599 = vmatprep.subr.mxu0 0.0
      %600 = vmatpush1.msra.mxu0 %v353
      %601 = vmatprep.subr.mxu0 0.0
      %602 = vmatpush1.msra.mxu0 %v354
      %603 = vmatprep.subr.mxu0 0.0
      %604 = vmatpush1.msra.mxu0 %v355
      %605 = vmatprep.mubr.f32.mxu0 %v445
      %606 = vmatmul.mubr.f32.gmra.mrb[0].mxu0 %v443
      %v607 = vpop.f32.mrb[0].mxu0
      %v608 = vadd.f32 %v538, %v607
      %v609 = vpop.f32.mrb[0].mxu0
      %610 = vdwg.mxu0
      %611 = vmatprep.subr.mxu0 0.0
      %612 = vmatpush1.msra.mxu0 %v356
      %613 = vmatprep.subr.mxu0 0.0
      %614 = vmatpush1.msra.mxu0 %v357
      %615 = vmatprep.subr.mxu0 0.0
      %616 = vmatpush1.msra.mxu0 %v358
      %617 = vmatprep.subr.mxu0 0.0
      %618 = vmatpush1.msra.mxu0 %v359
      %619 = vmatprep.subr.mxu0 0.0
      %620 = vmatpush1.msra.mxu0 %v360
      %621 = vmatprep.subr.mxu0 0.0
      %622 = vmatpush1.msra.mxu0 %v361
      %623 = vmatprep.subr.mxu0 0.0
      %624 = vmatpush1.msra.mxu0 %v362
      %625 = vmatprep.subr.mxu0 0.0
      %626 = vmatpush1.msra.mxu0 %v363
      %627 = vmatprep.subr.mxu0 0.0
      %628 = vmatpush1.msra.mxu0 %v364
      %629 = vmatprep.subr.mxu0 0.0
      %630 = vmatpush1.msra.mxu0 %v365
      %631 = vmatprep.subr.mxu0 0.0
      %632 = vmatpush1.msra.mxu0 %v366
      %633 = vmatprep.subr.mxu0 0.0
      %634 = vmatpush1.msra.mxu0 %v367
      %635 = vmatprep.subr.mxu0 0.0
      %636 = vmatpush1.msra.mxu0 %v368
      %637 = vmatprep.subr.mxu0 0.0
      %638 = vmatpush1.msra.mxu0 %v369
      %639 = vmatprep.subr.mxu0 0.0
      %640 = vmatpush1.msra.mxu0 %v370
      %641 = vmatprep.subr.mxu0 0.0
      %642 = vmatpush1.msra.mxu0 %v371
      %643 = vmatprep.subr.mxu0 0.0
      %644 = vmatpush1.msra.mxu0 %v372
      %645 = vmatprep.subr.mxu0 0.0
      %646 = vmatpush1.msra.mxu0 %v373
      %647 = vmatprep.subr.mxu0 0.0
      %648 = vmatpush1.msra.mxu0 %v374
      %649 = vmatprep.subr.mxu0 0.0
      %650 = vmatpush1.msra.mxu0 %v375
      %651 = vmatprep.subr.mxu0 0.0
      %652 = vmatpush1.msra.mxu0 %v376
      %653 = vmatprep.subr.mxu0 0.0
      %654 = vmatpush1.msra.mxu0 %v377
      %655 = vmatprep.subr.mxu0 0.0
      %656 = vmatpush1.msra.mxu0 %v378
      %657 = vmatprep.subr.mxu0 0.0
      %658 = vmatpush1.msra.mxu0 %v379
      %659 = vmatprep.subr.mxu0 0.0
      %660 = vmatpush1.msra.mxu0 %v380
      %661 = vmatprep.subr.mxu0 0.0
      %662 = vmatpush1.msra.mxu0 %v381
      %663 = vmatprep.subr.mxu0 0.0
      %664 = vmatpush1.msra.mxu0 %v382
      %665 = vmatprep.subr.mxu0 0.0
      %666 = vmatpush1.msra.mxu0 %v383
      %667 = vmatprep.subr.mxu0 0.0
      %668 = vmatpush1.msra.mxu0 %v384
      %669 = vmatprep.subr.mxu0 0.0
      %670 = vmatpush1.msra.mxu0 %v385
      %671 = vmatprep.subr.mxu0 0.0
      %672 = vmatpush1.msra.mxu0 %v386
      %673 = vmatprep.subr.mxu0 0.0
      %674 = vmatpush1.msra.mxu0 %v387
      %675 = vmatprep.mubr.f32.mxu0 %v461
      %676 = vmatmul.mubr.f32.gmra.mrb[0].mxu0 %v453
      %v677 = vpop.f32.mrb[0].mxu0
      %v678 = vadd.f32 %v608, %v677
      %v679 = vpop.f32.mrb[0].mxu0
      %680 = vdwg.mxu0
      %681 = vmatprep.subr.mxu0 0.0
      %682 = vmatpush1.msra.mxu0 %v388
      %683 = vmatprep.subr.mxu0 0.0
      %684 = vmatpush1.msra.mxu0 %v389
      %685 = vmatprep.subr.mxu0 0.0
      %686 = vmatpush1.msra.mxu0 %v390
      %687 = vmatprep.subr.mxu0 0.0
      %688 = vmatpush1.msra.mxu0 %v391
      %689 = vmatprep.subr.mxu0 0.0
      %690 = vmatpush1.msra.mxu0 %v392
      %691 = vmatprep.subr.mxu0 0.0
      %692 = vmatpush1.msra.mxu0 %v393
      %693 = vmatprep.subr.mxu0 0.0
      %694 = vmatpush1.msra.mxu0 %v394
      %695 = vmatprep.subr.mxu0 0.0
      %696 = vmatpush1.msra.mxu0 %v395
      %697 = vmatprep.subr.mxu0 0.0
      %698 = vmatpush1.msra.mxu0 %v396
      %699 = vmatprep.subr.mxu0 0.0
      %700 = vmatpush1.msra.mxu0 %v397
      %701 = vmatprep.subr.mxu0 0.0
      %702 = vmatpush1.msra.mxu0 %v398
      %703 = vmatprep.subr.mxu0 0.0
      %704 = vmatpush1.msra.mxu0 %v399
      %705 = vmatprep.subr.mxu0 0.0
      %706 = vmatpush1.msra.mxu0 %v400
      %707 = vmatprep.subr.mxu0 0.0
      %708 = vmatpush1.msra.mxu0 %v401
      %709 = vmatprep.subr.mxu0 0.0
      %710 = vmatpush1.msra.mxu0 %v402
      %711 = vmatprep.subr.mxu0 0.0
      %712 = vmatpush1.msra.mxu0 %v403
      %713 = vmatprep.subr.mxu0 0.0
      %714 = vmatpush1.msra.mxu0 %v404
      %715 = vmatprep.subr.mxu0 0.0
      %716 = vmatpush1.msra.mxu0 %v405
      %717 = vmatprep.subr.mxu0 0.0
      %718 = vmatpush1.msra.mxu0 %v406
      %719 = vmatprep.subr.mxu0 0.0
      %720 = vmatpush1.msra.mxu0 %v407
      %721 = vmatprep.subr.mxu0 0.0
      %722 = vmatpush1.msra.mxu0 %v408
      %723 = vmatprep.subr.mxu0 0.0
      %724 = vmatpush1.msra.mxu0 %v409
      %725 = vmatprep.subr.mxu0 0.0
      %726 = vmatpush1.msra.mxu0 %v410
      %727 = vmatprep.subr.mxu0 0.0
      %728 = vmatpush1.msra.mxu0 %v411
      %729 = vmatprep.subr.mxu0 0.0
      %730 = vmatpush1.msra.mxu0 %v412
      %731 = vmatprep.subr.mxu0 0.0
      %732 = vmatpush1.msra.mxu0 %v413
      %733 = vmatprep.subr.mxu0 0.0
      %734 = vmatpush1.msra.mxu0 %v414
      %735 = vmatprep.subr.mxu0 0.0
      %736 = vmatpush1.msra.mxu0 %v415
      %737 = vmatprep.subr.mxu0 0.0
      %738 = vmatpush1.msra.mxu0 %v416
      %739 = vmatprep.subr.mxu0 0.0
      %740 = vmatpush1.msra.mxu0 %v417
      %741 = vmatprep.subr.mxu0 0.0
      %742 = vmatpush1.msra.mxu0 %v418
      %743 = vmatprep.subr.mxu0 0.0
      %744 = vmatpush1.msra.mxu0 %v419
      %745 = vmatprep.mubr.f32.mxu0 %v462
      %746 = vmatmul.mubr.f32.gmra.mrb[0].mxu0 %v460
      %v747 = vpop.f32.mrb[0].mxu0
      %v748 = vadd.f32 %v678, %v747
      %v749 = vpop.f32.mrb[0].mxu0
      %750 = vdwg.mxu0
      %v751 = vmax.f32 %v748, 0.0
      %v752 = vld [vmem:[#allocation3] sm:$0x3]
      %v753 = vsub.f32 %v751, %v752
      %v754 = vld [vmem:[%s4] sm:$0xff]
      %v755 = vld [vmem:[%s4 + $0x8] sm:$0xff]
      %v756 = vld [vmem:[%s4 + $0x10] sm:$0xff]
      %v757 = vld [vmem:[%s4 + $0x18] sm:$0xff]
      %v758 = vld [vmem:[%s4 + $0x20] sm:$0xff]
      %v759 = vld [vmem:[%s4 + $0x28] sm:$0xff]
      %v760 = vld [vmem:[%s4 + $0x30] sm:$0xff]
      %v761 = vld [vmem:[%s4 + $0x38] sm:$0xff]
      %v762 = vld [vmem:[%s4 + $0x40] sm:$0xff]
      %v763 = vld [vmem:[%s4 + $0x48] sm:$0xff]
      %v764 = vld [vmem:[%s4 + $0x50] sm:$0xff]
      %v765 = vld [vmem:[%s4 + $0x58] sm:$0xff]
      %v766 = vld [vmem:[%s4 + $0x60] sm:$0xff]
      %v767 = vld [vmem:[%s4 + $0x68] sm:$0xff]
      %v768 = vld [vmem:[%s4 + $0x70] sm:$0xff]
      %v769 = vld [vmem:[%s4 + $0x78] sm:$0xff]
      %770 = vmatprep.subr.mxu0 0.0
      %771 = vmatpush1.msra.mxu0 %v754
      %772 = vmatprep.subr.mxu0 0.0
      %773 = vmatpush1.msra.mxu0 %v755
      %774 = vmatprep.subr.mxu0 0.0
      %775 = vmatpush1.msra.mxu0 %v756
      %776 = vmatprep.subr.mxu0 0.0
      %777 = vmatpush1.msra.mxu0 %v757
      %778 = vmatprep.subr.mxu0 0.0
      %779 = vmatpush1.msra.mxu0 %v758
      %780 = vmatprep.subr.mxu0 0.0
      %781 = vmatpush1.msra.mxu0 %v759
      %782 = vmatprep.subr.mxu0 0.0
      %783 = vmatpush1.msra.mxu0 %v760
      %784 = vmatprep.subr.mxu0 0.0
      %785 = vmatpush1.msra.mxu0 %v761
      %786 = vmatprep.subr.mxu0 0.0
      %787 = vmatpush1.msra.mxu0 %v762
      %788 = vmatprep.subr.mxu0 0.0
      %789 = vmatpush1.msra.mxu0 %v763
      %790 = vmatprep.subr.mxu0 0.0
      %791 = vmatpush1.msra.mxu0 %v764
      %792 = vmatprep.subr.mxu0 0.0
      %793 = vmatpush1.msra.mxu0 %v765
      %794 = vmatprep.subr.mxu0 0.0
      %795 = vmatpush1.msra.mxu0 %v766
      %796 = vmatprep.subr.mxu0 0.0
      %797 = vmatpush1.msra.mxu0 %v767
      %798 = vmatprep.subr.mxu0 0.0
      %799 = vmatpush1.msra.mxu0 %v768
      %800 = vmatprep.subr.mxu0 0.0
      %801 = vmatpush1.msra.mxu0 %v769
      %802 = vmatprep.subr.mxu0 0.0
      %803 = vmatpush1.msra.mxu0 0.0
      %804 = vmatprep.subr.mxu0 0.0
      %805 = vmatpush1.msra.mxu0 0.0
      %806 = vmatprep.subr.mxu0 0.0
      %807 = vmatpush1.msra.mxu0 0.0
      %808 = vmatprep.subr.mxu0 0.0
      %809 = vmatpush1.msra.mxu0 0.0
      %810 = vmatprep.subr.mxu0 0.0
      %811 = vmatpush1.msra.mxu0 0.0
      %812 = vmatprep.subr.mxu0 0.0
      %813 = vmatpush1.msra.mxu0 0.0
      %814 = vmatprep.subr.mxu0 0.0
      %815 = vmatpush1.msra.mxu0 0.0
      %816 = vmatprep.subr.mxu0 0.0
      %817 = vmatpush1.msra.mxu0 0.0
      %818 = vmatprep.subr.mxu0 0.0
      %819 = vmatpush1.msra.mxu0 0.0
      %820 = vmatprep.subr.mxu0 0.0
      %821 = vmatpush1.msra.mxu0 0.0
      %822 = vmatprep.subr.mxu0 0.0
      %823 = vmatpush1.msra.mxu0 0.0
      %824 = vmatprep.subr.mxu0 0.0
      %825 = vmatpush1.msra.mxu0 0.0
      %826 = vmatprep.subr.mxu0 0.0
      %827 = vmatpush1.msra.mxu0 0.0
      %828 = vmatprep.subr.mxu0 0.0
      %829 = vmatpush1.msra.mxu0 0.0
      %830 = vmatprep.subr.mxu0 0.0
      %831 = vmatpush1.msra.mxu0 0.0
      %832 = vmatprep.subr.mxu0 0.0
      %833 = vmatpush1.msra.mxu0 0.0
      %834 = vmatprep.mubr.f32.mxu0 0.0
      %835 = vmatmul.mubr.f32.gmra.mrb[0].mxu0 %v753
      %v836 = vpop.f32.mrb[0].mxu0
      %v837 = vadd.f32 1e-06, %v836
      %v838 = vpop.f32.mrb[0].mxu0
      %839 = vdwg.mxu0
      %v840 = vmul.f32 %v837, %v837
      %vm841 = vcmask 779264
      %v842 = vsel %vm841, %v840, 0.0
      %843 = vadd.xlane.f32.xlu0 %v842
      %v844 = vpop.xlane.xlu0 %843
      %v845 = vrsqrt.pop %v844
      %v846 = vmul.f32 %v844, %v845
      %vm847 = vcmp.eq.f32.partialorder %v844, inf
      %v848 = vsel %vm847, %v844, %v846
      %vm849 = vcmp.eq.f32.partialorder %v844, 0.0
      %v850 = vand.u32 %v844, 2147483648
      %v851 = vsel %vm849, %v850, %v848
      %852 = vst [vmem:[#allocation7] sm:$0x3] %v851
    $region33: #{tpu_custom_call.1} parent=1 // pred_fallthru
      _
    // Predicated region
    $region34: #{tpu_custom_call.1} parent=1 // pred_check
      _
    $region35: #{tpu_custom_call.1} parent=1 // pred_check_branch
      %854 = sbr.rel (0) target = $region37
    $region36: #{tpu_custom_call.1} parent=1 // pred_region
      %s856 = ssub.s32 32, 32
      %857 = vsyncadd [#allocation6], %s856
      %s859 = sshll.u32 [#allocation7], 4
      %s860 = int_to_ptr.vmem [resolvable:$true] %s859
      %862 = dma.vmem_to_hbm [thread:$0]  %s860, 32, %s5, [#allocation6]
    $region37: #{tpu_custom_call.1} parent=1 // pred_fallthru
      _
    // Predicated region
    $region38: #{tpu_custom_call.1} parent=1 // pred_check
      _
    $region39: #{tpu_custom_call.1} parent=1 // pred_check_branch
      %864 = sbr.rel (0) target = $region41
    $region40: #{tpu_custom_call.1} parent=1 // pred_region
      %865 = dma.done [#allocation6], 32
    $region41: #{tpu_custom_call.1} parent=1 // pred_fallthru
      _
    %866 = vsyncpa [#allocation5], 1
    %867 = vsyncpa [#allocation6], 1

</llo_original>
